<compile_context>
chip_gen: v7x
topology: tpu7x:2x2x1
jax: 0.10.0
libtpu: 0.0.40
codegen_flags: <defaults>
</compile_context>

<pallas_src>
import math

import jax
import jax.numpy as jnp
from jax.experimental import pallas as pl
from jax.experimental.pallas import tpu as pltpu

PAD = 128  # lane padding for every feature dimension


# ----------------------------- model structure -----------------------------

def prodnet_dims(in_N, num_L):
    """Layer widths of one ProdNet: [in_N, mid_N * num_L, out_N] (num_L+1 linear layers)."""
    if in_N % 2 == 0:
        mid_N = 6 * in_N
        out_N = in_N // 2
    else:
        mid_N = 6 * (in_N - 1) + 2
        out_N = in_N // 2 + 1
    return [in_N] + [mid_N] * num_L + [out_N]


def build_params(key, in_N, num_L):
    """Deterministic init (PyTorch nn.Linear-style U(-1/sqrt(fan_in), 1/sqrt(fan_in)))
    for the whole chain of ProdNets inside BiTreeProd_scale."""
    prodnets = []
    cur = in_N
    first = True
    while first or cur > 1:
        first = False
        dims = prodnet_dims(cur, num_L)
        layers = []
        for l in range(len(dims) - 1):
            fan_in, fan_out = dims[l], dims[l + 1]
            bound = 1.0 / math.sqrt(fan_in)
            key, kw, kb = jax.random.split(key, 3)
            W = jax.random.uniform(kw, (fan_in, fan_out), jnp.float32, -bound, bound)
            b = jax.random.uniform(kb, (fan_out,), jnp.float32, -bound, bound)
            layers.append((W, b))
        prodnets.append(layers)
        cur = dims[-1]
    return prodnets


def compute_scales(M, num_L, num_prod):
    """Python-float scale schedule: list of (M_i, M_i**2) used as  h = M_i^2 * P_i(h / M_i)."""
    scales = [(float(M), float(M) ** 2)]
    for _ in range(1, num_prod):
        delta = 3 * M ** 2 / 2 ** (2 * num_L + 2)
        M = M ** 2 + delta
        scales.append((float(M), float(M) ** 2))
    return scales


# ------------------------------- Pallas kernel ------------------------------

def make_kernel(relu_flags):
    """Fused forward: h <- relu?(h @ W_l + b_l) for every layer of every ProdNet.

    relu_flags is a static per-layer tuple (ReLU on all but the last layer of each ProdNet).
    The scale schedule has already been folded into W/b host-side, so no runtime scaling.
    """

    def kernel(x_ref, w_ref, b_ref, o_ref):
        h = x_ref[...]                                   # (tile_n, PAD)
        for l, do_relu in enumerate(relu_flags):         # fully unrolled, static trip count
            W = w_ref[l]                                 # (PAD, PAD)
            b = b_ref[l]                                 # (1, PAD)
            h = jnp.dot(h, W, preferred_element_type=jnp.float32) + b
            if do_relu:
                h = jnp.maximum(h, 0.0)
        o_ref[...] = h

    return kernel


def bitree_prod_scale(x, prodnets, M, num_L, tile_n=256):
    """x: (N, in_N) float32 -> (N, 1) float32, matching BiTreeProd_scale.forward."""
    N, in_N = x.shape
    num_prod = len(prodnets)
    scales = compute_scales(M, num_L, num_prod)

    assert tile_n % 8 == 0, "tile_n must be a multiple of 8 (sublane tiling)"
    # Pad N up to a multiple of tile_n so no tail samples are dropped (extra rows are
    # garbage but independent per-row and sliced off below).
    grid_n = pl.cdiv(N, tile_n)
    # NOTE: for best v7x utilization pick N / tile_n even (>= 2) so the "parallel" axis
    # shards across both TensorCores; the demo below uses N=512, tile_n=256 -> grid=(2,).
    N_pad = grid_n * tile_n

    x_p = jnp.zeros((N_pad, PAD), jnp.float32).at[:N, :in_N].set(x)

    # Pad + scale-fold the parameters, stacked into single weight / bias slabs.
    Ws, bs, relu_flags = [], [], []
    for p, layers in enumerate(prodnets):
        Mv, M_sq = scales[p]
        nl = len(layers)
        for l, (W, b) in enumerate(layers):
            # fold  h/M  into the first layer and  M^2 * (...)  into the last layer
            w_fac = (1.0 / Mv if l == 0 else 1.0) * (M_sq if l == nl - 1 else 1.0)
            b_fac = M_sq if l == nl - 1 else 1.0
            Wp = jnp.zeros((PAD, PAD), jnp.float32).at[: W.shape[0], : W.shape[1]].set(W * w_fac)
            bp = jnp.zeros((1, PAD), jnp.float32).at[0, : b.shape[0]].set(b * b_fac)
            Ws.append(Wp)
            bs.append(bp)
            relu_flags.append(l < nl - 1)

    W_stack = jnp.stack(Ws)          # (L_total, PAD, PAD)
    b_stack = jnp.stack(bs)          # (L_total, 1, PAD)
    L_total = len(relu_flags)
    out_N = prodnets[-1][-1][0].shape[1]   # final ProdNet out_N (== 1)

    kernel = make_kernel(tuple(relu_flags))

    out_padded = pl.pallas_call(
        kernel,
        out_shape=jax.ShapeDtypeStruct((N_pad, PAD), jnp.float32),
        grid=(grid_n,),
        in_specs=[
            pl.BlockSpec((tile_n, PAD), lambda i: (i, 0)),          # x tile
            pl.BlockSpec((L_total, PAD, PAD), lambda i: (0, 0, 0)),  # all weights, const block
            pl.BlockSpec((L_total, 1, PAD), lambda i: (0, 0, 0)),    # all biases,  const block
        ],
        out_specs=pl.BlockSpec((tile_n, PAD), lambda i: (i, 0)),
        compiler_params=pltpu.CompilerParams(dimension_semantics=("parallel",)),
    )(x_p, W_stack, b_stack)

    return out_padded[:N, :out_N]


# ------------------------------- reference ----------------------------------

def reference(x, prodnets, M, num_L):
    """Pure-JAX reference with the *unfolded* scale schedule (validates the weight fold)."""
    scales = compute_scales(M, num_L, len(prodnets))
    h = x
    for p, layers in enumerate(prodnets):
        Mv, M_sq = scales[p]
        h = h / Mv
        for l, (W, b) in enumerate(layers):
            h = h @ W + b
            if l < len(layers) - 1:
                h = jnp.maximum(h, 0.0)
        h = M_sq * h
    return h


# --------------------------------- main --------------------------------------

if __name__ == "__main__":
    in_N = 4      # -> ProdNet(4): mid 24, out 2 ; ProdNet(2): mid 12, out 1  (num_prod = 2)
    num_L = 3
    M = 2.0
    N = 512       # number of sample points; 512/256 -> even grid of 2 (both v7x cores busy)

    key = jax.random.PRNGKey(0)
    key, kx = jax.random.split(key)
    x = jax.random.uniform(kx, (N, in_N), jnp.float32, -2.0, 2.0)

    prodnets = build_params(key, in_N, num_L)

    out = bitree_prod_scale(x, prodnets, M, num_L, tile_n=256)
    out = jax.block_until_ready(out)

    ref = reference(x, prodnets, M, num_L)
    assert out.shape == (N, 1), out.shape
    assert jnp.allclose(out, ref, rtol=1e-4, atol=1e-4), float(jnp.max(jnp.abs(out - ref)))

    print("KERNEL_OK")
</pallas_src>

<mosaic_0001>
module attributes {stable_mosaic.version = 11 : i64} {
  func.func @kernel(%arg0: i32, %arg1: memref<256x128xf32, #tpu.memory_space<vmem>>, %arg2: memref<8x128x128xf32, #tpu.memory_space<vmem>>, %arg3: memref<8x1x128xf32, #tpu.memory_space<vmem>>, %arg4: memref<256x128xf32, #tpu.memory_space<vmem>>) attributes {dimension_semantics = [#tpu.dimension_semantics<parallel>], iteration_bounds = array<i64: 2>, scalar_prefetch = 0 : i64, scratch_operands = 0 : i64, tpu.core_type = #tpu.core_type<tc>, window_params = [{transform_indices = @transform_0, window_bounds = array<i64: 256, 128>}, {pipeline_mode = #tpu.pipeline_mode<synchronous>, transform_indices = @transform_1, window_bounds = array<i64: 8, 128, 128>}, {pipeline_mode = #tpu.pipeline_mode<synchronous>, transform_indices = @transform_2, window_bounds = array<i64: 8, 1, 128>}, {transform_indices = @transform_3, window_bounds = array<i64: 256, 128>}]} {
    %c0 = arith.constant 0 : index
    %c0_0 = arith.constant 0 : index
    %0 = vector.load %arg1[%c0, %c0_0] : memref<256x128xf32, #tpu.memory_space<vmem>>, vector<256x128xf32>
    %c0_1 = arith.constant 0 : index
    %c0_2 = arith.constant 0 : index
    %c0_3 = arith.constant 0 : index
    %1 = vector.load %arg2[%c0_1, %c0_2, %c0_3] : memref<8x128x128xf32, #tpu.memory_space<vmem>>, vector<1x128x128xf32>
    %2 = vector.shape_cast %1 : vector<1x128x128xf32> to vector<128x128xf32>
    %c0_4 = arith.constant 0 : index
    %c0_5 = arith.constant 0 : index
    %c0_6 = arith.constant 0 : index
    %3 = vector.load %arg3[%c0_4, %c0_5, %c0_6] : memref<8x1x128xf32, #tpu.memory_space<vmem>>, vector<1x1x128xf32>
    %4 = vector.shape_cast %3 : vector<1x1x128xf32> to vector<1x128xf32>
    %cst = arith.constant dense<0.000000e+00> : vector<256x128xf32>
    %5 = tpu.matmul %0, %2, %cst {dimension_numbers = #tpu.dot_dimension_numbers<[1], [0], [0], [1], [0, 0, 1, 1], [], []>} : vector<256x128xf32>, vector<128x128xf32>, vector<256x128xf32> -> vector<256x128xf32>
    %6 = vector.broadcast %4 : vector<1x128xf32> to vector<256x128xf32>
    %7 = arith.addf %5, %6 : vector<256x128xf32>
    %cst_7 = arith.constant 0.000000e+00 : f32
    %8 = vector.broadcast %cst_7 : f32 to vector<256x128xf32>
    %9 = arith.maximumf %7, %8 : vector<256x128xf32>
    %c1 = arith.constant 1 : index
    %c0_8 = arith.constant 0 : index
    %c0_9 = arith.constant 0 : index
    %10 = vector.load %arg2[%c1, %c0_8, %c0_9] : memref<8x128x128xf32, #tpu.memory_space<vmem>>, vector<1x128x128xf32>
    %11 = vector.shape_cast %10 : vector<1x128x128xf32> to vector<128x128xf32>
    %c1_10 = arith.constant 1 : index
    %c0_11 = arith.constant 0 : index
    %c0_12 = arith.constant 0 : index
    %12 = vector.load %arg3[%c1_10, %c0_11, %c0_12] : memref<8x1x128xf32, #tpu.memory_space<vmem>>, vector<1x1x128xf32>
    %13 = vector.shape_cast %12 : vector<1x1x128xf32> to vector<1x128xf32>
    %cst_13 = arith.constant dense<0.000000e+00> : vector<256x128xf32>
    %14 = tpu.matmul %9, %11, %cst_13 {dimension_numbers = #tpu.dot_dimension_numbers<[1], [0], [0], [1], [0, 0, 1, 1], [], []>} : vector<256x128xf32>, vector<128x128xf32>, vector<256x128xf32> -> vector<256x128xf32>
    %15 = vector.broadcast %13 : vector<1x128xf32> to vector<256x128xf32>
    %16 = arith.addf %14, %15 : vector<256x128xf32>
    %cst_14 = arith.constant 0.000000e+00 : f32
    %17 = vector.broadcast %cst_14 : f32 to vector<256x128xf32>
    %18 = arith.maximumf %16, %17 : vector<256x128xf32>
    %c2 = arith.constant 2 : index
    %c0_15 = arith.constant 0 : index
    %c0_16 = arith.constant 0 : index
    %19 = vector.load %arg2[%c2, %c0_15, %c0_16] : memref<8x128x128xf32, #tpu.memory_space<vmem>>, vector<1x128x128xf32>
    %20 = vector.shape_cast %19 : vector<1x128x128xf32> to vector<128x128xf32>
    %c2_17 = arith.constant 2 : index
    %c0_18 = arith.constant 0 : index
    %c0_19 = arith.constant 0 : index
    %21 = vector.load %arg3[%c2_17, %c0_18, %c0_19] : memref<8x1x128xf32, #tpu.memory_space<vmem>>, vector<1x1x128xf32>
    %22 = vector.shape_cast %21 : vector<1x1x128xf32> to vector<1x128xf32>
    %cst_20 = arith.constant dense<0.000000e+00> : vector<256x128xf32>
    %23 = tpu.matmul %18, %20, %cst_20 {dimension_numbers = #tpu.dot_dimension_numbers<[1], [0], [0], [1], [0, 0, 1, 1], [], []>} : vector<256x128xf32>, vector<128x128xf32>, vector<256x128xf32> -> vector<256x128xf32>
    %24 = vector.broadcast %22 : vector<1x128xf32> to vector<256x128xf32>
    %25 = arith.addf %23, %24 : vector<256x128xf32>
    %cst_21 = arith.constant 0.000000e+00 : f32
    %26 = vector.broadcast %cst_21 : f32 to vector<256x128xf32>
    %27 = arith.maximumf %25, %26 : vector<256x128xf32>
    %c3 = arith.constant 3 : index
    %c0_22 = arith.constant 0 : index
    %c0_23 = arith.constant 0 : index
    %28 = vector.load %arg2[%c3, %c0_22, %c0_23] : memref<8x128x128xf32, #tpu.memory_space<vmem>>, vector<1x128x128xf32>
    %29 = vector.shape_cast %28 : vector<1x128x128xf32> to vector<128x128xf32>
    %c3_24 = arith.constant 3 : index
    %c0_25 = arith.constant 0 : index
    %c0_26 = arith.constant 0 : index
    %30 = vector.load %arg3[%c3_24, %c0_25, %c0_26] : memref<8x1x128xf32, #tpu.memory_space<vmem>>, vector<1x1x128xf32>
    %31 = vector.shape_cast %30 : vector<1x1x128xf32> to vector<1x128xf32>
    %cst_27 = arith.constant dense<0.000000e+00> : vector<256x128xf32>
    %32 = tpu.matmul %27, %29, %cst_27 {dimension_numbers = #tpu.dot_dimension_numbers<[1], [0], [0], [1], [0, 0, 1, 1], [], []>} : vector<256x128xf32>, vector<128x128xf32>, vector<256x128xf32> -> vector<256x128xf32>
    %33 = vector.broadcast %31 : vector<1x128xf32> to vector<256x128xf32>
    %34 = arith.addf %32, %33 : vector<256x128xf32>
    %c4 = arith.constant 4 : index
    %c0_28 = arith.constant 0 : index
    %c0_29 = arith.constant 0 : index
    %35 = vector.load %arg2[%c4, %c0_28, %c0_29] : memref<8x128x128xf32, #tpu.memory_space<vmem>>, vector<1x128x128xf32>
    %36 = vector.shape_cast %35 : vector<1x128x128xf32> to vector<128x128xf32>
    %c4_30 = arith.constant 4 : index
    %c0_31 = arith.constant 0 : index
    %c0_32 = arith.constant 0 : index
    %37 = vector.load %arg3[%c4_30, %c0_31, %c0_32] : memref<8x1x128xf32, #tpu.memory_space<vmem>>, vector<1x1x128xf32>
    %38 = vector.shape_cast %37 : vector<1x1x128xf32> to vector<1x128xf32>
    %cst_33 = arith.constant dense<0.000000e+00> : vector<256x128xf32>
    %39 = tpu.matmul %34, %36, %cst_33 {dimension_numbers = #tpu.dot_dimension_numbers<[1], [0], [0], [1], [0, 0, 1, 1], [], []>} : vector<256x128xf32>, vector<128x128xf32>, vector<256x128xf32> -> vector<256x128xf32>
    %40 = vector.broadcast %38 : vector<1x128xf32> to vector<256x128xf32>
    %41 = arith.addf %39, %40 : vector<256x128xf32>
    %cst_34 = arith.constant 0.000000e+00 : f32
    %42 = vector.broadcast %cst_34 : f32 to vector<256x128xf32>
    %43 = arith.maximumf %41, %42 : vector<256x128xf32>
    %c5 = arith.constant 5 : index
    %c0_35 = arith.constant 0 : index
    %c0_36 = arith.constant 0 : index
    %44 = vector.load %arg2[%c5, %c0_35, %c0_36] : memref<8x128x128xf32, #tpu.memory_space<vmem>>, vector<1x128x128xf32>
    %45 = vector.shape_cast %44 : vector<1x128x128xf32> to vector<128x128xf32>
    %c5_37 = arith.constant 5 : index
    %c0_38 = arith.constant 0 : index
    %c0_39 = arith.constant 0 : index
    %46 = vector.load %arg3[%c5_37, %c0_38, %c0_39] : memref<8x1x128xf32, #tpu.memory_space<vmem>>, vector<1x1x128xf32>
    %47 = vector.shape_cast %46 : vector<1x1x128xf32> to vector<1x128xf32>
    %cst_40 = arith.constant dense<0.000000e+00> : vector<256x128xf32>
    %48 = tpu.matmul %43, %45, %cst_40 {dimension_numbers = #tpu.dot_dimension_numbers<[1], [0], [0], [1], [0, 0, 1, 1], [], []>} : vector<256x128xf32>, vector<128x128xf32>, vector<256x128xf32> -> vector<256x128xf32>
    %49 = vector.broadcast %47 : vector<1x128xf32> to vector<256x128xf32>
    %50 = arith.addf %48, %49 : vector<256x128xf32>
    %cst_41 = arith.constant 0.000000e+00 : f32
    %51 = vector.broadcast %cst_41 : f32 to vector<256x128xf32>
    %52 = arith.maximumf %50, %51 : vector<256x128xf32>
    %c6 = arith.constant 6 : index
    %c0_42 = arith.constant 0 : index
    %c0_43 = arith.constant 0 : index
    %53 = vector.load %arg2[%c6, %c0_42, %c0_43] : memref<8x128x128xf32, #tpu.memory_space<vmem>>, vector<1x128x128xf32>
    %54 = vector.shape_cast %53 : vector<1x128x128xf32> to vector<128x128xf32>
    %c6_44 = arith.constant 6 : index
    %c0_45 = arith.constant 0 : index
    %c0_46 = arith.constant 0 : index
    %55 = vector.load %arg3[%c6_44, %c0_45, %c0_46] : memref<8x1x128xf32, #tpu.memory_space<vmem>>, vector<1x1x128xf32>
    %56 = vector.shape_cast %55 : vector<1x1x128xf32> to vector<1x128xf32>
    %cst_47 = arith.constant dense<0.000000e+00> : vector<256x128xf32>
    %57 = tpu.matmul %52, %54, %cst_47 {dimension_numbers = #tpu.dot_dimension_numbers<[1], [0], [0], [1], [0, 0, 1, 1], [], []>} : vector<256x128xf32>, vector<128x128xf32>, vector<256x128xf32> -> vector<256x128xf32>
    %58 = vector.broadcast %56 : vector<1x128xf32> to vector<256x128xf32>
    %59 = arith.addf %57, %58 : vector<256x128xf32>
    %cst_48 = arith.constant 0.000000e+00 : f32
    %60 = vector.broadcast %cst_48 : f32 to vector<256x128xf32>
    %61 = arith.maximumf %59, %60 : vector<256x128xf32>
    %c7 = arith.constant 7 : index
    %c0_49 = arith.constant 0 : index
    %c0_50 = arith.constant 0 : index
    %62 = vector.load %arg2[%c7, %c0_49, %c0_50] : memref<8x128x128xf32, #tpu.memory_space<vmem>>, vector<1x128x128xf32>
    %63 = vector.shape_cast %62 : vector<1x128x128xf32> to vector<128x128xf32>
    %c7_51 = arith.constant 7 : index
    %c0_52 = arith.constant 0 : index
    %c0_53 = arith.constant 0 : index
    %64 = vector.load %arg3[%c7_51, %c0_52, %c0_53] : memref<8x1x128xf32, #tpu.memory_space<vmem>>, vector<1x1x128xf32>
    %65 = vector.shape_cast %64 : vector<1x1x128xf32> to vector<1x128xf32>
    %cst_54 = arith.constant dense<0.000000e+00> : vector<256x128xf32>
    %66 = tpu.matmul %61, %63, %cst_54 {dimension_numbers = #tpu.dot_dimension_numbers<[1], [0], [0], [1], [0, 0, 1, 1], [], []>} : vector<256x128xf32>, vector<128x128xf32>, vector<256x128xf32> -> vector<256x128xf32>
    %67 = vector.broadcast %65 : vector<1x128xf32> to vector<256x128xf32>
    %68 = arith.addf %66, %67 : vector<256x128xf32>
    %c0_55 = arith.constant 0 : index
    %c0_56 = arith.constant 0 : index
    %69 = vector.load %arg4[%c0_55, %c0_56] : memref<256x128xf32, #tpu.memory_space<vmem>>, vector<256x128xf32>
    tpu.vector_store %arg4[%c0_55, %c0_56], %68 {strides = array<i32>} : memref<256x128xf32, #tpu.memory_space<vmem>>, vector<256x128xf32>,
    return
  }
  func.func @transform_0(%arg0: i32) -> (i32, i32) {
    %c0_i32 = arith.constant 0 : i32
    %c0_i32_0 = arith.constant 0 : i32
    return %arg0, %c0_i32 : i32, i32
  }
  func.func @transform_1(%arg0: i32) -> (i32, i32, i32) {
    %c0_i32 = arith.constant 0 : i32
    %c0_i32_0 = arith.constant 0 : i32
    %c0_i32_1 = arith.constant 0 : i32
    %c0_i32_2 = arith.constant 0 : i32
    return %c0_i32, %c0_i32_0, %c0_i32_1 : i32, i32, i32
  }
  func.func @transform_2(%arg0: i32) -> (i32, i32, i32) {
    %c0_i32 = arith.constant 0 : i32
    %c0_i32_0 = arith.constant 0 : i32
    %c0_i32_1 = arith.constant 0 : i32
    %c0_i32_2 = arith.constant 0 : i32
    return %c0_i32, %c0_i32_0, %c0_i32_1 : i32, i32, i32
  }
  func.func @transform_3(%arg0: i32) -> (i32, i32) {
    %c0_i32 = arith.constant 0 : i32
    %c0_i32_0 = arith.constant 0 : i32
    return %arg0, %c0_i32 : i32, i32
  }
}

</mosaic_0001>

<llo_original>
// kernel: tpu_custom_call.1
$region0: #{tpu_custom_call.1}
  #allocation0 [shape = 'u32[]', space=smem, size = 0x4, offset = 0x4, fixed_abs, tag = 'smem constant byte address 0x4 - core index']
  #allocation1 [shape = 'u32[144,128]{1,0:T(1,128)}', space=vmem, size = 0x12000, scoped, tag = 'internal scratch']
  %s0 = inlined_call_operand.hbm [shape: f32[512,128], index: 0, kind: input, shape index: {}]
  %s1 = inlined_call_operand.hbm [shape: f32[8,128,128], index: 1, kind: input, shape index: {}]
  %s2 = inlined_call_operand.hbm [shape: f32[8,1,128], index: 2, kind: input, shape index: {}]
  %s3 = inlined_call_operand.hbm [shape: f32[512,128], index: 3, kind: output, shape index: {}]
  %s4 = sld [smem:[#allocation0]]
  $region57: #{tpu_custom_call.1} parent=0
    _
  %s6 = ssub.s32 1, %s4
  %s7 = scalar_select 0, %s6, %s4
  $region1: #{tpu_custom_call.1} parent=0
    #allocation2 [shape = 'u8[262144]{0}', space=vmem, size = 0x40000, scoped, tag = 'input window, operand 0']
    #allocation3 [shape = 's32[2]{0}', space=sflag, size = 0x8, scoped, tag = 'scoped memory for tpu_custom_call.1']
    #allocation4 [shape = 's32[2]{0}', space=sflag, size = 0x8, scoped, tag = 'scoped memory for tpu_custom_call.1']
    #allocation5 [shape = 'u8[524288]{0}', space=vmem, size = 0x80000, scoped, tag = 'input window, operand 1, single buffered']
    #allocation6 [shape = 's32[1]{0}', space=sflag, size = 0x4, scoped, tag = 'scoped memory for tpu_custom_call.1']
    #allocation7 [shape = 'u8[4096]{0}', space=vmem, size = 0x1000, scoped, tag = 'input window, operand 2, single buffered']
    #allocation8 [shape = 'u8[262144]{0}', space=vmem, size = 0x40000, scoped, tag = 'output window, operand 0']
    %8 = vsyncpa [#allocation3], 0
    %s9 = scalar_lea.sflag [#allocation3], 1
    %10 = vsyncpa %s9, 0
    %11 = vsyncpa [#allocation6], 0
    %12 = vsyncpa [#allocation4], 0
    %s13 = scalar_lea.sflag [#allocation4], 1
    %14 = vsyncpa %s13, 0
    loop: start=0, step=1, limit=4
    $region2: #{tpu_custom_call.1} parent=1 // loop_pre_header
      _
    $region3: #{tpu_custom_call.1} parent=1 // loop_header
      %s16 = sphi 0, %s20
      %p17 = scmp.ge.s32.totalorder %s16, 4
      %s26 = sphi 0, %s28
      %s29 = sphi 0, %s26
      %s30 = sphi 0, %s29
      %s46 = sphi 0, %s30
      %s50 = sphi 0, %s50
      %s52 = sphi 0, %s50
      %s53 = sphi 0, %s52
      %s67 = sphi 0, %s53
      %s71 = sphi 0, %s71
      %s73 = sphi 0, %s71
      %s74 = sphi 0, %s73
      %s88 = sphi 0, %s74
      %s94 = sphi 0, %s96
      %s97 = sphi 0, %s94
      %s98 = sphi 0, %s97
      %s114 = sphi 0, %s98
    $region4: #{tpu_custom_call.1} parent=1 // loop_header_branch
      %19 = sbr.rel (%p17) target = $region8
    $region5: #{tpu_custom_call.1} parent=1 // loop_body
      %s21 = ssub.s32 %s16, 1
      %s22 = ssub.s32 %s16, 2
      %s23 = sadd.s32 %s16, 1
      %s24 = ssub.s32 %s16, %s23
      %p25 = scmp.eq.s32.totalorder %s24, 0
      %s27 = sadd.s32 %s26, 1
      %s28 = scalar_select %p25, %s26, %s27
      %p31 = pneg %p25
      %p32 = scmp.eq.s32.totalorder %s16, 1
      %p33 = por %p31, %p32
      %p34 = scmp.ne.s32.totalorder %s26, %s29
      %p35 = scmp.eq.s32.totalorder %s16, 0
      %p36 = por %p34, %p35
      %p37 = scmp.ne.s32.totalorder %s26, %s29
      %p38 = scmp.eq.s32.totalorder %s21, 1
      %p39 = por %p37, %p38
      %p40 = scmp.ne.s32.totalorder %s29, %s30
      %p41 = scmp.eq.s32.totalorder %s21, 0
      %p42 = por %p40, %p41
      %p43 = scmp.ne.s32.totalorder %s29, %s30
      %p44 = scmp.eq.s32.totalorder %s22, 1
      %p45 = por %p43, %p44
      %p47 = scmp.ne.s32.totalorder %s30, %s46
      %p48 = scmp.eq.s32.totalorder %s22, 0
      %p49 = por %p47, %p48
      %s51 = sadd.s32 %s50, 1
      %p54 = scmp.eq.s32.totalorder %s16, 1
      %p55 = scmp.ne.s32.totalorder %s50, %s52
      %p56 = scmp.eq.s32.totalorder %s16, 0
      %p57 = por %p55, %p56
      %p58 = scmp.ne.s32.totalorder %s50, %s52
      %p59 = scmp.eq.s32.totalorder %s21, 1
      %p60 = por %p58, %p59
      %p61 = scmp.ne.s32.totalorder %s52, %s53
      %p62 = scmp.eq.s32.totalorder %s21, 0
      %p63 = por %p61, %p62
      %p64 = scmp.ne.s32.totalorder %s52, %s53
      %p65 = scmp.eq.s32.totalorder %s22, 1
      %p66 = por %p64, %p65
      %p68 = scmp.ne.s32.totalorder %s53, %s67
      %p69 = scmp.eq.s32.totalorder %s22, 0
      %p70 = por %p68, %p69
      %s72 = sadd.s32 %s71, 1
      %p75 = scmp.eq.s32.totalorder %s16, 1
      %p76 = scmp.ne.s32.totalorder %s71, %s73
      %p77 = scmp.eq.s32.totalorder %s16, 0
      %p78 = por %p76, %p77
      %p79 = scmp.ne.s32.totalorder %s71, %s73
      %p80 = scmp.eq.s32.totalorder %s21, 1
      %p81 = por %p79, %p80
      %p82 = scmp.ne.s32.totalorder %s73, %s74
      %p83 = scmp.eq.s32.totalorder %s21, 0
      %p84 = por %p82, %p83
      %p85 = scmp.ne.s32.totalorder %s73, %s74
      %p86 = scmp.eq.s32.totalorder %s22, 1
      %p87 = por %p85, %p86
      %p89 = scmp.ne.s32.totalorder %s74, %s88
      %p90 = scmp.eq.s32.totalorder %s22, 0
      %p91 = por %p89, %p90
      %s92 = ssub.s32 %s16, %s23
      %p93 = scmp.eq.s32.totalorder %s92, 0
      %s95 = sadd.s32 %s94, 1
      %s96 = scalar_select %p93, %s94, %s95
      %p99 = pneg %p93
      %p100 = scmp.eq.s32.totalorder %s16, 1
      %p101 = por %p99, %p100
      %p102 = scmp.ne.s32.totalorder %s94, %s97
      %p103 = scmp.eq.s32.totalorder %s16, 0
      %p104 = por %p102, %p103
      %p105 = scmp.ne.s32.totalorder %s94, %s97
      %p106 = scmp.eq.s32.totalorder %s21, 1
      %p107 = por %p105, %p106
      %p108 = scmp.ne.s32.totalorder %s97, %s98
      %p109 = scmp.eq.s32.totalorder %s21, 0
      %p110 = por %p108, %p109
      %p111 = scmp.ne.s32.totalorder %s97, %s98
      %p112 = scmp.eq.s32.totalorder %s22, 1
      %p113 = por %p111, %p112
      %p115 = scmp.ne.s32.totalorder %s98, %s114
      %p116 = scmp.eq.s32.totalorder %s22, 0
      %p117 = por %p115, %p116
      %p118 = scmp.le.s32.totalorder 1, %s16
      %p119 = scmp.lt.s32.totalorder %s16, 3
      %p120 = pnand %p118, %p119
      %p121 = pneg %p120
      // Predicated region
      $region9: #{tpu_custom_call.1} parent=5 // pred_check
        _
      $region10: #{tpu_custom_call.1} parent=5 // pred_check_branch
        %123 = sbr.rel (%p120) target = $region12
      $region11: #{tpu_custom_call.1} parent=5 // pred_region
        %s124 = ssub.s32 %s16, 1
        // Predicated region
        $region13: #{tpu_custom_call.1} parent=11 // pred_check
          %p125 = pneg %p63
        $region14: #{tpu_custom_call.1} parent=11 // pred_check_branch
          %127 = sbr.rel (%p125) target = $region16
        $region15: #{tpu_custom_call.1} parent=11 // pred_region
          %s129 = ssub.s32 16384, 16384
          %130 = vsyncadd [#allocation6], %s129
          %s131 = sshll.u32 [#allocation5], 4
          %s132 = int_to_ptr.vmem [resolvable:$true] %s131
          %137 = dma.hbm_to_vmem [thread:$0]  %s1, 16384, %s132, [#allocation6], 128, 128, 8
        $region16: #{tpu_custom_call.1} parent=11 // pred_fallthru
          _
        // Predicated region
        $region17: #{tpu_custom_call.1} parent=11 // pred_check
          %p138 = pneg %p84
        $region18: #{tpu_custom_call.1} parent=11 // pred_check_branch
          %140 = sbr.rel (%p138) target = $region20
        $region19: #{tpu_custom_call.1} parent=11 // pred_region
          %s142 = ssub.s32 128, 128
          %143 = vsyncadd [#allocation6], %s142
          %s144 = sshll.u32 [#allocation7], 4
          %s145 = int_to_ptr.vmem [resolvable:$true] %s144
          %150 = dma.hbm_to_vmem [thread:$0]  %s2, 128, %s145, [#allocation6], 16, 16, 1
        $region20: #{tpu_custom_call.1} parent=11 // pred_fallthru
          _
      $region12: #{tpu_custom_call.1} parent=5 // pred_fallthru
        _
      %p151 = scmp.lt.s32.totalorder %s16, 2
      // Predicated region
      $region21: #{tpu_custom_call.1} parent=5 // pred_check
        %p152 = pneg %p151
      $region22: #{tpu_custom_call.1} parent=5 // pred_check_branch
        %154 = sbr.rel (%p152) target = $region24
      $region23: #{tpu_custom_call.1} parent=5 // pred_region
        // Predicated region
        $region25: #{tpu_custom_call.1} parent=23 // pred_check
          %p155 = pneg %p36
        $region26: #{tpu_custom_call.1} parent=23 // pred_check_branch
          %157 = sbr.rel (%p155) target = $region28
        $region27: #{tpu_custom_call.1} parent=23 // pred_region
          %s158 = sand.u32 %s26, 1
          %s159 = scalar_lea.sflag [#allocation3], %s158
          %s160 = sand.u32 %s26, 1
          %s161 = smul.addr %s160, 256
          %s162 = scalar_lea.vmem [#allocation2], %s161
          %s163 = smul.u32 32, %s16
          %s165 = ssub.s32 4096, 4096
          %166 = vsyncadd %s159, %s165
          %s167 = smul.addr %s163, 128
          %s168 = scalar_lea.hbm %s0, %s167
          %s169 = sshll.u32 %s162, 4
          %s170 = int_to_ptr.vmem [resolvable:$true] %s169
          %175 = dma.hbm_to_vmem [thread:$0]  %s168, 4096, %s170, %s159, 128, 128, 8
        $region28: #{tpu_custom_call.1} parent=23 // pred_fallthru
          _
      $region24: #{tpu_custom_call.1} parent=5 // pred_fallthru
        _
      %p176 = scmp.le.s32.totalorder 1, %s16
      %p177 = scmp.lt.s32.totalorder %s16, 3
      %p178 = pnand %p176, %p177
      %p179 = pneg %p178
      // Predicated region
      $region29: #{tpu_custom_call.1} parent=5 // pred_check
        _
      $region30: #{tpu_custom_call.1} parent=5 // pred_check_branch
        %181 = sbr.rel (%p178) target = $region32
      $region31: #{tpu_custom_call.1} parent=5 // pred_region
        %s182 = ssub.s32 %s16, 1
        %s183 = sand.u32 %s29, 1
        %s184 = scalar_lea.sflag [#allocation3], %s183
        %s185 = sand.u32 %s29, 1
        %s186 = smul.addr %s185, 256
        %s187 = scalar_lea.vmem [#allocation2], %s186
        // Predicated region
        $region33: #{tpu_custom_call.1} parent=31 // pred_check
          %p188 = pneg %p42
        $region34: #{tpu_custom_call.1} parent=31 // pred_check_branch
          %190 = sbr.rel (%p188) target = $region36
        $region35: #{tpu_custom_call.1} parent=31 // pred_region
          %191 = dma.done %s184, 4096
        $region36: #{tpu_custom_call.1} parent=31 // pred_fallthru
          _
        // Predicated region
        $region37: #{tpu_custom_call.1} parent=31 // pred_check
          %p192 = pneg %p63
        $region38: #{tpu_custom_call.1} parent=31 // pred_check_branch
          %194 = sbr.rel (%p192) target = $region40
        $region39: #{tpu_custom_call.1} parent=31 // pred_region
          %195 = dma.done [#allocation6], 16384
        $region40: #{tpu_custom_call.1} parent=31 // pred_fallthru
          _
        // Predicated region
        $region41: #{tpu_custom_call.1} parent=31 // pred_check
          %p196 = pneg %p84
        $region42: #{tpu_custom_call.1} parent=31 // pred_check_branch
          %198 = sbr.rel (%p196) target = $region44
        $region43: #{tpu_custom_call.1} parent=31 // pred_region
          %199 = dma.done [#allocation6], 128
        $region44: #{tpu_custom_call.1} parent=31 // pred_fallthru
          _
        %s200 = sand.u32 %s29, 1
        %s201 = scalar_lea.sflag [#allocation3], %s200
        %s202 = sand.u32 %s29, 1
        %s203 = smul.addr %s202, 256
        %s204 = scalar_lea.vmem [#allocation2], %s203
        %p205 = pneg %p42
        %p206 = pneg %p39
        %p207 = pneg %p63
        %p208 = pneg %p60
        %p209 = pneg %p84
        %p210 = pneg %p81
        %p211 = pneg %p110
        %p212 = pneg %p107
        %s213 = sand.u32 %s97, 1
        %s214 = scalar_lea.sflag [#allocation4], %s213
        %s215 = sand.u32 %s97, 1
        %s216 = smul.addr %s215, 256
        %s217 = scalar_lea.vmem [#allocation8], %s216
        %s218 = smul.u32 32, %s21
        %s219 = smul.u32 32, %s21
        %v220 = vld [vmem:[%s187] sm:$0xff]
        %v221 = vld [vmem:[%s187 + $0x8] sm:$0xff]
        %v222 = vld [vmem:[%s187 + $0x10] sm:$0xff]
        %v223 = vld [vmem:[%s187 + $0x18] sm:$0xff]
        %v224 = vld [vmem:[%s187 + $0x20] sm:$0xff]
        %v225 = vld [vmem:[%s187 + $0x28] sm:$0xff]
        %v226 = vld [vmem:[%s187 + $0x30] sm:$0xff]
        %v227 = vld [vmem:[%s187 + $0x38] sm:$0xff]
        %v228 = vld [vmem:[%s187 + $0x40] sm:$0xff]
        %v229 = vld [vmem:[%s187 + $0x48] sm:$0xff]
        %v230 = vld [vmem:[%s187 + $0x50] sm:$0xff]
        %v231 = vld [vmem:[%s187 + $0x58] sm:$0xff]
        %v232 = vld [vmem:[%s187 + $0x60] sm:$0xff]
        %v233 = vld [vmem:[%s187 + $0x68] sm:$0xff]
        %v234 = vld [vmem:[%s187 + $0x70] sm:$0xff]
        %v235 = vld [vmem:[%s187 + $0x78] sm:$0xff]
        %v236 = vld [vmem:[%s187 + $0x80] sm:$0xff]
        %v237 = vld [vmem:[%s187 + $0x88] sm:$0xff]
        %v238 = vld [vmem:[%s187 + $0x90] sm:$0xff]
        %v239 = vld [vmem:[%s187 + $0x98] sm:$0xff]
        %v240 = vld [vmem:[%s187 + $0xa0] sm:$0xff]
        %v241 = vld [vmem:[%s187 + $0xa8] sm:$0xff]
        %v242 = vld [vmem:[%s187 + $0xb0] sm:$0xff]
        %v243 = vld [vmem:[%s187 + $0xb8] sm:$0xff]
        %v244 = vld [vmem:[%s187 + $0xc0] sm:$0xff]
        %v245 = vld [vmem:[%s187 + $0xc8] sm:$0xff]
        %v246 = vld [vmem:[%s187 + $0xd0] sm:$0xff]
        %v247 = vld [vmem:[%s187 + $0xd8] sm:$0xff]
        %v248 = vld [vmem:[%s187 + $0xe0] sm:$0xff]
        %v249 = vld [vmem:[%s187 + $0xe8] sm:$0xff]
        %v250 = vld [vmem:[%s187 + $0xf0] sm:$0xff]
        %v251 = vld [vmem:[%s187 + $0xf8] sm:$0xff]
        %v252 = vld [vmem:[#allocation5] sm:$0xff]
        %v253 = vld [vmem:[#allocation5 + $0x8] sm:$0xff]
        %v254 = vld [vmem:[#allocation5 + $0x10] sm:$0xff]
        %v255 = vld [vmem:[#allocation5 + $0x18] sm:$0xff]
        %v256 = vld [vmem:[#allocation5 + $0x20] sm:$0xff]
        %v257 = vld [vmem:[#allocation5 + $0x28] sm:$0xff]
        %v258 = vld [vmem:[#allocation5 + $0x30] sm:$0xff]
        %v259 = vld [vmem:[#allocation5 + $0x38] sm:$0xff]
        %v260 = vld [vmem:[#allocation5 + $0x40] sm:$0xff]
        %v261 = vld [vmem:[#allocation5 + $0x48] sm:$0xff]
        %v262 = vld [vmem:[#allocation5 + $0x50] sm:$0xff]
        %v263 = vld [vmem:[#allocation5 + $0x58] sm:$0xff]
        %v264 = vld [vmem:[#allocation5 + $0x60] sm:$0xff]
        %v265 = vld [vmem:[#allocation5 + $0x68] sm:$0xff]
        %v266 = vld [vmem:[#allocation5 + $0x70] sm:$0xff]
        %v267 = vld [vmem:[#allocation5 + $0x78] sm:$0xff]
        %v268 = vld [vmem:[#allocation7] sm:$0x1]
        %v270 = vlaneseq
        %v271 = vshrl.u32 %v270, 7
        %v272 = vsub.s32 0, %v271
        %v273 = vrot.slane %v268, %v272
        %275 = vmatprep.subr.mxu0 0.0
        %276 = vmatpush1.msra.mxu0 %v252
        %277 = vmatprep.subr.mxu0 0.0
        %278 = vmatpush1.msra.mxu0 %v253
        %279 = vmatprep.subr.mxu0 0.0
        %280 = vmatpush1.msra.mxu0 %v254
        %281 = vmatprep.subr.mxu0 0.0
        %282 = vmatpush1.msra.mxu0 %v255
        %283 = vmatprep.subr.mxu0 0.0
        %284 = vmatpush1.msra.mxu0 %v256
        %285 = vmatprep.subr.mxu0 0.0
        %286 = vmatpush1.msra.mxu0 %v257
        %287 = vmatprep.subr.mxu0 0.0
        %288 = vmatpush1.msra.mxu0 %v258
        %289 = vmatprep.subr.mxu0 0.0
        %290 = vmatpush1.msra.mxu0 %v259
        %291 = vmatprep.subr.mxu0 0.0
        %292 = vmatpush1.msra.mxu0 %v260
        %293 = vmatprep.subr.mxu0 0.0
        %294 = vmatpush1.msra.mxu0 %v261
        %295 = vmatprep.subr.mxu0 0.0
        %296 = vmatpush1.msra.mxu0 %v262
        %297 = vmatprep.subr.mxu0 0.0
        %298 = vmatpush1.msra.mxu0 %v263
        %299 = vmatprep.subr.mxu0 0.0
        %300 = vmatpush1.msra.mxu0 %v264
        %301 = vmatprep.subr.mxu0 0.0
        %302 = vmatpush1.msra.mxu0 %v265
        %303 = vmatprep.subr.mxu0 0.0
        %304 = vmatpush1.msra.mxu0 %v266
        %305 = vmatprep.subr.mxu0 0.0
        %306 = vmatpush1.msra.mxu0 %v267
        %307 = vmatprep.subr.mxu0 0.0
        %308 = vmatpush1.msra.mxu0 0.0
        %309 = vmatprep.subr.mxu0 0.0
        %310 = vmatpush1.msra.mxu0 0.0
        %311 = vmatprep.subr.mxu0 0.0
        %312 = vmatpush1.msra.mxu0 0.0
        %313 = vmatprep.subr.mxu0 0.0
        %314 = vmatpush1.msra.mxu0 0.0
        %315 = vmatprep.subr.mxu0 0.0
        %316 = vmatpush1.msra.mxu0 0.0
        %317 = vmatprep.subr.mxu0 0.0
        %318 = vmatpush1.msra.mxu0 0.0
        %319 = vmatprep.subr.mxu0 0.0
        %320 = vmatpush1.msra.mxu0 0.0
        %321 = vmatprep.subr.mxu0 0.0
        %322 = vmatpush1.msra.mxu0 0.0
        %323 = vmatprep.subr.mxu0 0.0
        %324 = vmatpush1.msra.mxu0 0.0
        %325 = vmatprep.subr.mxu0 0.0
        %326 = vmatpush1.msra.mxu0 0.0
        %327 = vmatprep.subr.mxu0 0.0
        %328 = vmatpush1.msra.mxu0 0.0
        %329 = vmatprep.subr.mxu0 0.0
        %330 = vmatpush1.msra.mxu0 0.0
        %331 = vmatprep.subr.mxu0 0.0
        %332 = vmatpush1.msra.mxu0 0.0
        %333 = vmatprep.subr.mxu0 0.0
        %334 = vmatpush1.msra.mxu0 0.0
        %335 = vmatprep.subr.mxu0 0.0
        %336 = vmatpush1.msra.mxu0 0.0
        %337 = vmatprep.subr.mxu0 0.0
        %338 = vmatpush1.msra.mxu0 0.0
        %339 = vmatprep.mubr.f32.mxu0 0.0
        %340 = vmatmul.mubr.f32.gmra.mrb[0].mxu0 %v220
        %v341 = vpop.f32.mrb[0].mxu0
        %v342 = vadd.f32 %v273, %v341
        %v343 = vpop.f32.mrb[0].mxu0
        %344 = vmatprep.mubr.f32.mxu0 0.0
        %345 = vmatmul.mubr.f32.gmra.mrb[0].mxu0 %v221
        %v346 = vpop.f32.mrb[0].mxu0
        %v347 = vadd.f32 %v273, %v346
        %v348 = vpop.f32.mrb[0].mxu0
        %349 = vmatprep.mubr.f32.mxu0 0.0
        %350 = vmatmul.mubr.f32.gmra.mrb[0].mxu0 %v222
        %v351 = vpop.f32.mrb[0].mxu0
        %v352 = vadd.f32 %v273, %v351
        %v353 = vpop.f32.mrb[0].mxu0
        %354 = vmatprep.mubr.f32.mxu0 0.0
        %355 = vmatmul.mubr.f32.gmra.mrb[0].mxu0 %v223
        %v356 = vpop.f32.mrb[0].mxu0
        %v357 = vadd.f32 %v273, %v356
        %v358 = vpop.f32.mrb[0].mxu0
        %359 = vmatprep.mubr.f32.mxu0 0.0
        %360 = vmatmul.mubr.f32.gmra.mrb[0].mxu0 %v224
        %v361 = vpop.f32.mrb[0].mxu0
        %v362 = vadd.f32 %v273, %v361
        %v363 = vpop.f32.mrb[0].mxu0
        %364 = vmatprep.mubr.f32.mxu0 0.0
        %365 = vmatmul.mubr.f32.gmra.mrb[0].mxu0 %v225
        %v366 = vpop.f32.mrb[0].mxu0
        %v367 = vadd.f32 %v273, %v366
        %v368 = vpop.f32.mrb[0].mxu0
        %369 = vmatprep.mubr.f32.mxu0 0.0
        %370 = vmatmul.mubr.f32.gmra.mrb[0].mxu0 %v226
        %v371 = vpop.f32.mrb[0].mxu0
        %v372 = vadd.f32 %v273, %v371
        %v373 = vpop.f32.mrb[0].mxu0
        %374 = vmatprep.mubr.f32.mxu0 0.0
        %375 = vmatmul.mubr.f32.gmra.mrb[0].mxu0 %v227
        %v376 = vpop.f32.mrb[0].mxu0
        %v377 = vadd.f32 %v273, %v376
        %v378 = vpop.f32.mrb[0].mxu0
        %379 = vmatprep.mubr.f32.mxu0 0.0
        %380 = vmatmul.mubr.f32.gmra.mrb[0].mxu0 %v228
        %v381 = vpop.f32.mrb[0].mxu0
        %v382 = vadd.f32 %v273, %v381
        %v383 = vpop.f32.mrb[0].mxu0
        %384 = vmatprep.mubr.f32.mxu0 0.0
        %385 = vmatmul.mubr.f32.gmra.mrb[0].mxu0 %v229
        %v386 = vpop.f32.mrb[0].mxu0
        %v387 = vadd.f32 %v273, %v386
        %v388 = vpop.f32.mrb[0].mxu0
        %389 = vmatprep.mubr.f32.mxu0 0.0
        %390 = vmatmul.mubr.f32.gmra.mrb[0].mxu0 %v230
        %v391 = vpop.f32.mrb[0].mxu0
        %v392 = vadd.f32 %v273, %v391
        %v393 = vpop.f32.mrb[0].mxu0
        %394 = vmatprep.mubr.f32.mxu0 0.0
        %395 = vmatmul.mubr.f32.gmra.mrb[0].mxu0 %v231
        %v396 = vpop.f32.mrb[0].mxu0
        %v397 = vadd.f32 %v273, %v396
        %v398 = vpop.f32.mrb[0].mxu0
        %399 = vmatprep.mubr.f32.mxu0 0.0
        %400 = vmatmul.mubr.f32.gmra.mrb[0].mxu0 %v232
        %v401 = vpop.f32.mrb[0].mxu0
        %v402 = vadd.f32 %v273, %v401
        %v403 = vpop.f32.mrb[0].mxu0
        %404 = vmatprep.mubr.f32.mxu0 0.0
        %405 = vmatmul.mubr.f32.gmra.mrb[0].mxu0 %v233
        %v406 = vpop.f32.mrb[0].mxu0
        %v407 = vadd.f32 %v273, %v406
        %v408 = vpop.f32.mrb[0].mxu0
        %409 = vmatprep.mubr.f32.mxu0 0.0
        %410 = vmatmul.mubr.f32.gmra.mrb[0].mxu0 %v234
        %v411 = vpop.f32.mrb[0].mxu0
        %v412 = vadd.f32 %v273, %v411
        %v413 = vpop.f32.mrb[0].mxu0
        %414 = vmatprep.mubr.f32.mxu0 0.0
        %415 = vmatmul.mubr.f32.gmra.mrb[0].mxu0 %v235
        %v416 = vpop.f32.mrb[0].mxu0
        %v417 = vadd.f32 %v273, %v416
        %v418 = vpop.f32.mrb[0].mxu0
        %419 = vmatprep.mubr.f32.mxu0 0.0
        %420 = vmatmul.mubr.f32.gmra.mrb[0].mxu0 %v236
        %v421 = vpop.f32.mrb[0].mxu0
        %v422 = vadd.f32 %v273, %v421
        %v423 = vpop.f32.mrb[0].mxu0
        %424 = vmatprep.mubr.f32.mxu0 0.0
        %425 = vmatmul.mubr.f32.gmra.mrb[0].mxu0 %v237
        %v426 = vpop.f32.mrb[0].mxu0
        %v427 = vadd.f32 %v273, %v426
        %v428 = vpop.f32.mrb[0].mxu0
        %429 = vmatprep.mubr.f32.mxu0 0.0
        %430 = vmatmul.mubr.f32.gmra.mrb[0].mxu0 %v238
        %v431 = vpop.f32.mrb[0].mxu0
        %v432 = vadd.f32 %v273, %v431
        %v433 = vpop.f32.mrb[0].mxu0
        %434 = vmatprep.mubr.f32.mxu0 0.0
        %435 = vmatmul.mubr.f32.gmra.mrb[0].mxu0 %v239
        %v436 = vpop.f32.mrb[0].mxu0
        %v437 = vadd.f32 %v273, %v436
        %v438 = vpop.f32.mrb[0].mxu0
        %439 = vmatprep.mubr.f32.mxu0 0.0
        %440 = vmatmul.mubr.f32.gmra.mrb[0].mxu0 %v240
        %v441 = vpop.f32.mrb[0].mxu0
        %v442 = vadd.f32 %v273, %v441
        %v443 = vpop.f32.mrb[0].mxu0
        %444 = vmatprep.mubr.f32.mxu0 0.0
        %445 = vmatmul.mubr.f32.gmra.mrb[0].mxu0 %v241
        %v446 = vpop.f32.mrb[0].mxu0
        %v447 = vadd.f32 %v273, %v446
        %v448 = vpop.f32.mrb[0].mxu0
        %449 = vmatprep.mubr.f32.mxu0 0.0
        %450 = vmatmul.mubr.f32.gmra.mrb[0].mxu0 %v242
        %v451 = vpop.f32.mrb[0].mxu0
        %v452 = vadd.f32 %v273, %v451
        %v453 = vpop.f32.mrb[0].mxu0
        %454 = vmatprep.mubr.f32.mxu0 0.0
        %455 = vmatmul.mubr.f32.gmra.mrb[0].mxu0 %v243
        %v456 = vpop.f32.mrb[0].mxu0
        %v457 = vadd.f32 %v273, %v456
        %v458 = vpop.f32.mrb[0].mxu0
        %459 = vmatprep.mubr.f32.mxu0 0.0
        %460 = vmatmul.mubr.f32.gmra.mrb[0].mxu0 %v244
        %v461 = vpop.f32.mrb[0].mxu0
        %v462 = vadd.f32 %v273, %v461
        %v463 = vpop.f32.mrb[0].mxu0
        %464 = vmatprep.mubr.f32.mxu0 0.0
        %465 = vmatmul.mubr.f32.gmra.mrb[0].mxu0 %v245
        %v466 = vpop.f32.mrb[0].mxu0
        %v467 = vadd.f32 %v273, %v466
        %v468 = vpop.f32.mrb[0].mxu0
        %469 = vmatprep.mubr.f32.mxu0 0.0
        %470 = vmatmul.mubr.f32.gmra.mrb[0].mxu0 %v246
        %v471 = vpop.f32.mrb[0].mxu0
        %v472 = vadd.f32 %v273, %v471
        %v473 = vpop.f32.mrb[0].mxu0
        %474 = vmatprep.mubr.f32.mxu0 0.0
        %475 = vmatmul.mubr.f32.gmra.mrb[0].mxu0 %v247
        %v476 = vpop.f32.mrb[0].mxu0
        %v477 = vadd.f32 %v273, %v476
        %v478 = vpop.f32.mrb[0].mxu0
        %479 = vmatprep.mubr.f32.mxu0 0.0
        %480 = vmatmul.mubr.f32.gmra.mrb[0].mxu0 %v248
        %v481 = vpop.f32.mrb[0].mxu0
        %v482 = vadd.f32 %v273, %v481
        %v483 = vpop.f32.mrb[0].mxu0
        %484 = vmatprep.mubr.f32.mxu0 0.0
        %485 = vmatmul.mubr.f32.gmra.mrb[0].mxu0 %v249
        %v486 = vpop.f32.mrb[0].mxu0
        %v487 = vadd.f32 %v273, %v486
        %v488 = vpop.f32.mrb[0].mxu0
        %489 = vmatprep.mubr.f32.mxu0 0.0
        %490 = vmatmul.mubr.f32.gmra.mrb[0].mxu0 %v250
        %v491 = vpop.f32.mrb[0].mxu0
        %v492 = vadd.f32 %v273, %v491
        %v493 = vpop.f32.mrb[0].mxu0
        %494 = vmatprep.mubr.f32.mxu0 0.0
        %495 = vmatmul.mubr.f32.gmra.mrb[0].mxu0 %v251
        %v496 = vpop.f32.mrb[0].mxu0
        %v497 = vadd.f32 %v273, %v496
        %v498 = vpop.f32.mrb[0].mxu0
        %499 = vdwg.mxu0
        %v500 = vmax.f32 %v342, 0.0
        %v501 = vmax.f32 %v347, 0.0
        %v502 = vmax.f32 %v352, 0.0
        %v503 = vmax.f32 %v357, 0.0
        %v504 = vmax.f32 %v362, 0.0
        %v505 = vmax.f32 %v367, 0.0
        %v506 = vmax.f32 %v372, 0.0
        %v507 = vmax.f32 %v377, 0.0
        %v508 = vmax.f32 %v382, 0.0
        %v509 = vmax.f32 %v387, 0.0
        %v510 = vmax.f32 %v392, 0.0
        %v511 = vmax.f32 %v397, 0.0
        %v512 = vmax.f32 %v402, 0.0
        %v513 = vmax.f32 %v407, 0.0
        %v514 = vmax.f32 %v412, 0.0
        %v515 = vmax.f32 %v417, 0.0
        %v516 = vmax.f32 %v422, 0.0
        %v517 = vmax.f32 %v427, 0.0
        %v518 = vmax.f32 %v432, 0.0
        %v519 = vmax.f32 %v437, 0.0
        %v520 = vmax.f32 %v442, 0.0
        %v521 = vmax.f32 %v447, 0.0
        %v522 = vmax.f32 %v452, 0.0
        %v523 = vmax.f32 %v457, 0.0
        %v524 = vmax.f32 %v462, 0.0
        %v525 = vmax.f32 %v467, 0.0
        %v526 = vmax.f32 %v472, 0.0
        %v527 = vmax.f32 %v477, 0.0
        %v528 = vmax.f32 %v482, 0.0
        %v529 = vmax.f32 %v487, 0.0
        %v530 = vmax.f32 %v492, 0.0
        %v531 = vmax.f32 %v497, 0.0
        %s532 = scalar_lea.vmem [#allocation5], 128
        %v533 = vld [vmem:[%s532] sm:$0xff]
        %v534 = vld [vmem:[%s532 + $0x8] sm:$0xff]
        %v535 = vld [vmem:[%s532 + $0x10] sm:$0xff]
        %v536 = vld [vmem:[%s532 + $0x18] sm:$0xff]
        %v537 = vld [vmem:[%s532 + $0x20] sm:$0xff]
        %v538 = vld [vmem:[%s532 + $0x28] sm:$0xff]
        %v539 = vld [vmem:[%s532 + $0x30] sm:$0xff]
        %v540 = vld [vmem:[%s532 + $0x38] sm:$0xff]
        %v541 = vld [vmem:[%s532 + $0x40] sm:$0xff]
        %v542 = vld [vmem:[%s532 + $0x48] sm:$0xff]
        %v543 = vld [vmem:[%s532 + $0x50] sm:$0xff]
        %v544 = vld [vmem:[%s532 + $0x58] sm:$0xff]
        %v545 = vld [vmem:[%s532 + $0x60] sm:$0xff]
        %v546 = vld [vmem:[%s532 + $0x68] sm:$0xff]
        %v547 = vld [vmem:[%s532 + $0x70] sm:$0xff]
        %v548 = vld [vmem:[%s532 + $0x78] sm:$0xff]
        %s549 = scalar_lea.vmem [#allocation7], 1
        %v550 = vld [vmem:[%s549] sm:$0x1]
        %v552 = vlaneseq
        %v553 = vshrl.u32 %v552, 7
        %v554 = vsub.s32 0, %v553
        %v555 = vrot.slane %v550, %v554
        %557 = vmatprep.subr.mxu0 0.0
        %558 = vmatpush1.msra.mxu0 %v533
        %559 = vmatprep.subr.mxu0 0.0
        %560 = vmatpush1.msra.mxu0 %v534
        %561 = vmatprep.subr.mxu0 0.0
        %562 = vmatpush1.msra.mxu0 %v535
        %563 = vmatprep.subr.mxu0 0.0
        %564 = vmatpush1.msra.mxu0 %v536
        %565 = vmatprep.subr.mxu0 0.0
        %566 = vmatpush1.msra.mxu0 %v537
        %567 = vmatprep.subr.mxu0 0.0
        %568 = vmatpush1.msra.mxu0 %v538
        %569 = vmatprep.subr.mxu0 0.0
        %570 = vmatpush1.msra.mxu0 %v539
        %571 = vmatprep.subr.mxu0 0.0
        %572 = vmatpush1.msra.mxu0 %v540
        %573 = vmatprep.subr.mxu0 0.0
        %574 = vmatpush1.msra.mxu0 %v541
        %575 = vmatprep.subr.mxu0 0.0
        %576 = vmatpush1.msra.mxu0 %v542
        %577 = vmatprep.subr.mxu0 0.0
        %578 = vmatpush1.msra.mxu0 %v543
        %579 = vmatprep.subr.mxu0 0.0
        %580 = vmatpush1.msra.mxu0 %v544
        %581 = vmatprep.subr.mxu0 0.0
        %582 = vmatpush1.msra.mxu0 %v545
        %583 = vmatprep.subr.mxu0 0.0
        %584 = vmatpush1.msra.mxu0 %v546
        %585 = vmatprep.subr.mxu0 0.0
        %586 = vmatpush1.msra.mxu0 %v547
        %587 = vmatprep.subr.mxu0 0.0
        %588 = vmatpush1.msra.mxu0 %v548
        %589 = vmatprep.subr.mxu0 0.0
        %590 = vmatpush1.msra.mxu0 0.0
        %591 = vmatprep.subr.mxu0 0.0
        %592 = vmatpush1.msra.mxu0 0.0
        %593 = vmatprep.subr.mxu0 0.0
        %594 = vmatpush1.msra.mxu0 0.0
        %595 = vmatprep.subr.mxu0 0.0
        %596 = vmatpush1.msra.mxu0 0.0
        %597 = vmatprep.subr.mxu0 0.0
        %598 = vmatpush1.msra.mxu0 0.0
        %599 = vmatprep.subr.mxu0 0.0
        %600 = vmatpush1.msra.mxu0 0.0
        %601 = vmatprep.subr.mxu0 0.0
        %602 = vmatpush1.msra.mxu0 0.0
        %603 = vmatprep.subr.mxu0 0.0
        %604 = vmatpush1.msra.mxu0 0.0
        %605 = vmatprep.subr.mxu0 0.0
        %606 = vmatpush1.msra.mxu0 0.0
        %607 = vmatprep.subr.mxu0 0.0
        %608 = vmatpush1.msra.mxu0 0.0
        %609 = vmatprep.subr.mxu0 0.0
        %610 = vmatpush1.msra.mxu0 0.0
        %611 = vmatprep.subr.mxu0 0.0
        %612 = vmatpush1.msra.mxu0 0.0
        %613 = vmatprep.subr.mxu0 0.0
        %614 = vmatpush1.msra.mxu0 0.0
        %615 = vmatprep.subr.mxu0 0.0
        %616 = vmatpush1.msra.mxu0 0.0
        %617 = vmatprep.subr.mxu0 0.0
        %618 = vmatpush1.msra.mxu0 0.0
        %619 = vmatprep.subr.mxu0 0.0
        %620 = vmatpush1.msra.mxu0 0.0
        %621 = vmatprep.mubr.f32.mxu0 0.0
        %622 = vmatmul.mubr.f32.gmra.mrb[0].mxu0 %v500
        %v623 = vpop.f32.mrb[0].mxu0
        %v624 = vadd.f32 %v555, %v623
        %v625 = vpop.f32.mrb[0].mxu0
        %626 = vmatprep.mubr.f32.mxu0 0.0
        %627 = vmatmul.mubr.f32.gmra.mrb[0].mxu0 %v501
        %v628 = vpop.f32.mrb[0].mxu0
        %v629 = vadd.f32 %v555, %v628
        %v630 = vpop.f32.mrb[0].mxu0
        %631 = vmatprep.mubr.f32.mxu0 0.0
        %632 = vmatmul.mubr.f32.gmra.mrb[0].mxu0 %v502
        %v633 = vpop.f32.mrb[0].mxu0
        %v634 = vadd.f32 %v555, %v633
        %v635 = vpop.f32.mrb[0].mxu0
        %636 = vmatprep.mubr.f32.mxu0 0.0
        %637 = vmatmul.mubr.f32.gmra.mrb[0].mxu0 %v503
        %v638 = vpop.f32.mrb[0].mxu0
        %v639 = vadd.f32 %v555, %v638
        %v640 = vpop.f32.mrb[0].mxu0
        %641 = vmatprep.mubr.f32.mxu0 0.0
        %642 = vmatmul.mubr.f32.gmra.mrb[0].mxu0 %v504
        %v643 = vpop.f32.mrb[0].mxu0
        %v644 = vadd.f32 %v555, %v643
        %v645 = vpop.f32.mrb[0].mxu0
        %646 = vmatprep.mubr.f32.mxu0 0.0
        %647 = vmatmul.mubr.f32.gmra.mrb[0].mxu0 %v505
        %v648 = vpop.f32.mrb[0].mxu0
        %v649 = vadd.f32 %v555, %v648
        %v650 = vpop.f32.mrb[0].mxu0
        %651 = vmatprep.mubr.f32.mxu0 0.0
        %652 = vmatmul.mubr.f32.gmra.mrb[0].mxu0 %v506
        %v653 = vpop.f32.mrb[0].mxu0
        %v654 = vadd.f32 %v555, %v653
        %v655 = vpop.f32.mrb[0].mxu0
        %656 = vmatprep.mubr.f32.mxu0 0.0
        %657 = vmatmul.mubr.f32.gmra.mrb[0].mxu0 %v507
        %v658 = vpop.f32.mrb[0].mxu0
        %v659 = vadd.f32 %v555, %v658
        %v660 = vpop.f32.mrb[0].mxu0
        %661 = vmatprep.mubr.f32.mxu0 0.0
        %662 = vmatmul.mubr.f32.gmra.mrb[0].mxu0 %v508
        %v663 = vpop.f32.mrb[0].mxu0
        %v664 = vadd.f32 %v555, %v663
        %v665 = vpop.f32.mrb[0].mxu0
        %666 = vmatprep.mubr.f32.mxu0 0.0
        %667 = vmatmul.mubr.f32.gmra.mrb[0].mxu0 %v509
        %v668 = vpop.f32.mrb[0].mxu0
        %v669 = vadd.f32 %v555, %v668
        %v670 = vpop.f32.mrb[0].mxu0
        %671 = vmatprep.mubr.f32.mxu0 0.0
        %672 = vmatmul.mubr.f32.gmra.mrb[0].mxu0 %v510
        %v673 = vpop.f32.mrb[0].mxu0
        %v674 = vadd.f32 %v555, %v673
        %v675 = vpop.f32.mrb[0].mxu0
        %676 = vmatprep.mubr.f32.mxu0 0.0
        %677 = vmatmul.mubr.f32.gmra.mrb[0].mxu0 %v511
        %v678 = vpop.f32.mrb[0].mxu0
        %v679 = vadd.f32 %v555, %v678
        %v680 = vpop.f32.mrb[0].mxu0
        %681 = vmatprep.mubr.f32.mxu0 0.0
        %682 = vmatmul.mubr.f32.gmra.mrb[0].mxu0 %v512
        %v683 = vpop.f32.mrb[0].mxu0
        %v684 = vadd.f32 %v555, %v683
        %v685 = vpop.f32.mrb[0].mxu0
        %686 = vmatprep.mubr.f32.mxu0 0.0
        %687 = vmatmul.mubr.f32.gmra.mrb[0].mxu0 %v513
        %v688 = vpop.f32.mrb[0].mxu0
        %v689 = vadd.f32 %v555, %v688
        %v690 = vpop.f32.mrb[0].mxu0
        %691 = vmatprep.mubr.f32.mxu0 0.0
        %692 = vmatmul.mubr.f32.gmra.mrb[0].mxu0 %v514
        %v693 = vpop.f32.mrb[0].mxu0
        %v694 = vadd.f32 %v555, %v693
        %v695 = vpop.f32.mrb[0].mxu0
        %696 = vmatprep.mubr.f32.mxu0 0.0
        %697 = vmatmul.mubr.f32.gmra.mrb[0].mxu0 %v515
        %v698 = vpop.f32.mrb[0].mxu0
        %v699 = vadd.f32 %v555, %v698
        %v700 = vpop.f32.mrb[0].mxu0
        %701 = vmatprep.mubr.f32.mxu0 0.0
        %702 = vmatmul.mubr.f32.gmra.mrb[0].mxu0 %v516
        %v703 = vpop.f32.mrb[0].mxu0
        %v704 = vadd.f32 %v555, %v703
        %v705 = vpop.f32.mrb[0].mxu0
        %706 = vmatprep.mubr.f32.mxu0 0.0
        %707 = vmatmul.mubr.f32.gmra.mrb[0].mxu0 %v517
        %v708 = vpop.f32.mrb[0].mxu0
        %v709 = vadd.f32 %v555, %v708
        %v710 = vpop.f32.mrb[0].mxu0
        %711 = vmatprep.mubr.f32.mxu0 0.0
        %712 = vmatmul.mubr.f32.gmra.mrb[0].mxu0 %v518
        %v713 = vpop.f32.mrb[0].mxu0
        %v714 = vadd.f32 %v555, %v713
        %v715 = vpop.f32.mrb[0].mxu0
        %716 = vmatprep.mubr.f32.mxu0 0.0
        %717 = vmatmul.mubr.f32.gmra.mrb[0].mxu0 %v519
        %v718 = vpop.f32.mrb[0].mxu0
        %v719 = vadd.f32 %v555, %v718
        %v720 = vpop.f32.mrb[0].mxu0
        %721 = vmatprep.mubr.f32.mxu0 0.0
        %722 = vmatmul.mubr.f32.gmra.mrb[0].mxu0 %v520
        %v723 = vpop.f32.mrb[0].mxu0
        %v724 = vadd.f32 %v555, %v723
        %v725 = vpop.f32.mrb[0].mxu0
        %726 = vmatprep.mubr.f32.mxu0 0.0
        %727 = vmatmul.mubr.f32.gmra.mrb[0].mxu0 %v521
        %v728 = vpop.f32.mrb[0].mxu0
        %v729 = vadd.f32 %v555, %v728
        %v730 = vpop.f32.mrb[0].mxu0
        %731 = vmatprep.mubr.f32.mxu0 0.0
        %732 = vmatmul.mubr.f32.gmra.mrb[0].mxu0 %v522
        %v733 = vpop.f32.mrb[0].mxu0
        %v734 = vadd.f32 %v555, %v733
        %v735 = vpop.f32.mrb[0].mxu0
        %736 = vmatprep.mubr.f32.mxu0 0.0
        %737 = vmatmul.mubr.f32.gmra.mrb[0].mxu0 %v523
        %v738 = vpop.f32.mrb[0].mxu0
        %v739 = vadd.f32 %v555, %v738
        %v740 = vpop.f32.mrb[0].mxu0
        %741 = vmatprep.mubr.f32.mxu0 0.0
        %742 = vmatmul.mubr.f32.gmra.mrb[0].mxu0 %v524
        %v743 = vpop.f32.mrb[0].mxu0
        %v744 = vadd.f32 %v555, %v743
        %v745 = vpop.f32.mrb[0].mxu0
        %746 = vmatprep.mubr.f32.mxu0 0.0
        %747 = vmatmul.mubr.f32.gmra.mrb[0].mxu0 %v525
        %v748 = vpop.f32.mrb[0].mxu0
        %v749 = vadd.f32 %v555, %v748
        %v750 = vpop.f32.mrb[0].mxu0
        %751 = vmatprep.mubr.f32.mxu0 0.0
        %752 = vmatmul.mubr.f32.gmra.mrb[0].mxu0 %v526
        %v753 = vpop.f32.mrb[0].mxu0
        %v754 = vadd.f32 %v555, %v753
        %v755 = vpop.f32.mrb[0].mxu0
        %756 = vmatprep.mubr.f32.mxu0 0.0
        %757 = vmatmul.mubr.f32.gmra.mrb[0].mxu0 %v527
        %v758 = vpop.f32.mrb[0].mxu0
        %v759 = vadd.f32 %v555, %v758
        %v760 = vpop.f32.mrb[0].mxu0
        %761 = vmatprep.mubr.f32.mxu0 0.0
        %762 = vmatmul.mubr.f32.gmra.mrb[0].mxu0 %v528
        %v763 = vpop.f32.mrb[0].mxu0
        %v764 = vadd.f32 %v555, %v763
        %v765 = vpop.f32.mrb[0].mxu0
        %766 = vmatprep.mubr.f32.mxu0 0.0
        %767 = vmatmul.mubr.f32.gmra.mrb[0].mxu0 %v529
        %v768 = vpop.f32.mrb[0].mxu0
        %v769 = vadd.f32 %v555, %v768
        %v770 = vpop.f32.mrb[0].mxu0
        %771 = vmatprep.mubr.f32.mxu0 0.0
        %772 = vmatmul.mubr.f32.gmra.mrb[0].mxu0 %v530
        %v773 = vpop.f32.mrb[0].mxu0
        %v774 = vadd.f32 %v555, %v773
        %v775 = vpop.f32.mrb[0].mxu0
        %776 = vmatprep.mubr.f32.mxu0 0.0
        %777 = vmatmul.mubr.f32.gmra.mrb[0].mxu0 %v531
        %v778 = vpop.f32.mrb[0].mxu0
        %v779 = vadd.f32 %v555, %v778
        %v780 = vpop.f32.mrb[0].mxu0
        %781 = vdwg.mxu0
        %v782 = vmax.f32 %v624, 0.0
        %v783 = vmax.f32 %v629, 0.0
        %v784 = vmax.f32 %v634, 0.0
        %v785 = vmax.f32 %v639, 0.0
        %v786 = vmax.f32 %v644, 0.0
        %v787 = vmax.f32 %v649, 0.0
        %v788 = vmax.f32 %v654, 0.0
        %v789 = vmax.f32 %v659, 0.0
        %v790 = vmax.f32 %v664, 0.0
        %v791 = vmax.f32 %v669, 0.0
        %v792 = vmax.f32 %v674, 0.0
        %v793 = vmax.f32 %v679, 0.0
        %v794 = vmax.f32 %v684, 0.0
        %v795 = vmax.f32 %v689, 0.0
        %v796 = vmax.f32 %v694, 0.0
        %v797 = vmax.f32 %v699, 0.0
        %v798 = vmax.f32 %v704, 0.0
        %v799 = vmax.f32 %v709, 0.0
        %v800 = vmax.f32 %v714, 0.0
        %v801 = vmax.f32 %v719, 0.0
        %v802 = vmax.f32 %v724, 0.0
        %v803 = vmax.f32 %v729, 0.0
        %v804 = vmax.f32 %v734, 0.0
        %v805 = vmax.f32 %v739, 0.0
        %v806 = vmax.f32 %v744, 0.0
        %v807 = vmax.f32 %v749, 0.0
        %v808 = vmax.f32 %v754, 0.0
        %v809 = vmax.f32 %v759, 0.0
        %v810 = vmax.f32 %v764, 0.0
        %v811 = vmax.f32 %v769, 0.0
        %v812 = vmax.f32 %v774, 0.0
        %v813 = vmax.f32 %v779, 0.0
        %s814 = scalar_lea.vmem [#allocation5], 256
        %v815 = vld [vmem:[%s814] sm:$0xff]
        %v816 = vld [vmem:[%s814 + $0x8] sm:$0xff]
        %v817 = vld [vmem:[%s814 + $0x10] sm:$0xff]
        %v818 = vld [vmem:[%s814 + $0x18] sm:$0xff]
        %v819 = vld [vmem:[%s814 + $0x20] sm:$0xff]
        %v820 = vld [vmem:[%s814 + $0x28] sm:$0xff]
        %v821 = vld [vmem:[%s814 + $0x30] sm:$0xff]
        %v822 = vld [vmem:[%s814 + $0x38] sm:$0xff]
        %v823 = vld [vmem:[%s814 + $0x40] sm:$0xff]
        %v824 = vld [vmem:[%s814 + $0x48] sm:$0xff]
        %v825 = vld [vmem:[%s814 + $0x50] sm:$0xff]
        %v826 = vld [vmem:[%s814 + $0x58] sm:$0xff]
        %v827 = vld [vmem:[%s814 + $0x60] sm:$0xff]
        %v828 = vld [vmem:[%s814 + $0x68] sm:$0xff]
        %v829 = vld [vmem:[%s814 + $0x70] sm:$0xff]
        %v830 = vld [vmem:[%s814 + $0x78] sm:$0xff]
        %s831 = scalar_lea.vmem [#allocation7], 2
        %v832 = vld [vmem:[%s831] sm:$0x1]
        %v834 = vlaneseq
        %v835 = vshrl.u32 %v834, 7
        %v836 = vsub.s32 0, %v835
        %v837 = vrot.slane %v832, %v836
        %839 = vmatprep.subr.mxu0 0.0
        %840 = vmatpush1.msra.mxu0 %v815
        %841 = vmatprep.subr.mxu0 0.0
        %842 = vmatpush1.msra.mxu0 %v816
        %843 = vmatprep.subr.mxu0 0.0
        %844 = vmatpush1.msra.mxu0 %v817
        %845 = vmatprep.subr.mxu0 0.0
        %846 = vmatpush1.msra.mxu0 %v818
        %847 = vmatprep.subr.mxu0 0.0
        %848 = vmatpush1.msra.mxu0 %v819
        %849 = vmatprep.subr.mxu0 0.0
        %850 = vmatpush1.msra.mxu0 %v820
        %851 = vmatprep.subr.mxu0 0.0
        %852 = vmatpush1.msra.mxu0 %v821
        %853 = vmatprep.subr.mxu0 0.0
        %854 = vmatpush1.msra.mxu0 %v822
        %855 = vmatprep.subr.mxu0 0.0
        %856 = vmatpush1.msra.mxu0 %v823
        %857 = vmatprep.subr.mxu0 0.0
        %858 = vmatpush1.msra.mxu0 %v824
        %859 = vmatprep.subr.mxu0 0.0
        %860 = vmatpush1.msra.mxu0 %v825
        %861 = vmatprep.subr.mxu0 0.0
        %862 = vmatpush1.msra.mxu0 %v826
        %863 = vmatprep.subr.mxu0 0.0
        %864 = vmatpush1.msra.mxu0 %v827
        %865 = vmatprep.subr.mxu0 0.0
        %866 = vmatpush1.msra.mxu0 %v828
        %867 = vmatprep.subr.mxu0 0.0
        %868 = vmatpush1.msra.mxu0 %v829
        %869 = vmatprep.subr.mxu0 0.0
        %870 = vmatpush1.msra.mxu0 %v830
        %871 = vmatprep.subr.mxu0 0.0
        %872 = vmatpush1.msra.mxu0 0.0
        %873 = vmatprep.subr.mxu0 0.0
        %874 = vmatpush1.msra.mxu0 0.0
        %875 = vmatprep.subr.mxu0 0.0
        %876 = vmatpush1.msra.mxu0 0.0
        %877 = vmatprep.subr.mxu0 0.0
        %878 = vmatpush1.msra.mxu0 0.0
        %879 = vmatprep.subr.mxu0 0.0
        %880 = vmatpush1.msra.mxu0 0.0
        %881 = vmatprep.subr.mxu0 0.0
        %882 = vmatpush1.msra.mxu0 0.0
        %883 = vmatprep.subr.mxu0 0.0
        %884 = vmatpush1.msra.mxu0 0.0
        %885 = vmatprep.subr.mxu0 0.0
        %886 = vmatpush1.msra.mxu0 0.0
        %887 = vmatprep.subr.mxu0 0.0
        %888 = vmatpush1.msra.mxu0 0.0
        %889 = vmatprep.subr.mxu0 0.0
        %890 = vmatpush1.msra.mxu0 0.0
        %891 = vmatprep.subr.mxu0 0.0
        %892 = vmatpush1.msra.mxu0 0.0
        %893 = vmatprep.subr.mxu0 0.0
        %894 = vmatpush1.msra.mxu0 0.0
        %895 = vmatprep.subr.mxu0 0.0
        %896 = vmatpush1.msra.mxu0 0.0
        %897 = vmatprep.subr.mxu0 0.0
        %898 = vmatpush1.msra.mxu0 0.0
        %899 = vmatprep.subr.mxu0 0.0
        %900 = vmatpush1.msra.mxu0 0.0
        %901 = vmatprep.subr.mxu0 0.0
        %902 = vmatpush1.msra.mxu0 0.0
        %903 = vmatprep.mubr.f32.mxu0 0.0
        %904 = vmatmul.mubr.f32.gmra.mrb[0].mxu0 %v782
        %v905 = vpop.f32.mrb[0].mxu0
        %v906 = vadd.f32 %v837, %v905
        %v907 = vpop.f32.mrb[0].mxu0
        %908 = vmatprep.mubr.f32.mxu0 0.0
        %909 = vmatmul.mubr.f32.gmra.mrb[0].mxu0 %v783
        %v910 = vpop.f32.mrb[0].mxu0
        %v911 = vadd.f32 %v837, %v910
        %v912 = vpop.f32.mrb[0].mxu0
        %913 = vmatprep.mubr.f32.mxu0 0.0
        %914 = vmatmul.mubr.f32.gmra.mrb[0].mxu0 %v784
        %v915 = vpop.f32.mrb[0].mxu0
        %v916 = vadd.f32 %v837, %v915
        %v917 = vpop.f32.mrb[0].mxu0
        %918 = vmatprep.mubr.f32.mxu0 0.0
        %919 = vmatmul.mubr.f32.gmra.mrb[0].mxu0 %v785
        %v920 = vpop.f32.mrb[0].mxu0
        %v921 = vadd.f32 %v837, %v920
        %v922 = vpop.f32.mrb[0].mxu0
        %923 = vmatprep.mubr.f32.mxu0 0.0
        %924 = vmatmul.mubr.f32.gmra.mrb[0].mxu0 %v786
        %v925 = vpop.f32.mrb[0].mxu0
        %v926 = vadd.f32 %v837, %v925
        %v927 = vpop.f32.mrb[0].mxu0
        %928 = vmatprep.mubr.f32.mxu0 0.0
        %929 = vmatmul.mubr.f32.gmra.mrb[0].mxu0 %v787
        %v930 = vpop.f32.mrb[0].mxu0
        %v931 = vadd.f32 %v837, %v930
        %v932 = vpop.f32.mrb[0].mxu0
        %933 = vmatprep.mubr.f32.mxu0 0.0
        %934 = vmatmul.mubr.f32.gmra.mrb[0].mxu0 %v788
        %v935 = vpop.f32.mrb[0].mxu0
        %v936 = vadd.f32 %v837, %v935
        %v937 = vpop.f32.mrb[0].mxu0
        %938 = vmatprep.mubr.f32.mxu0 0.0
        %939 = vmatmul.mubr.f32.gmra.mrb[0].mxu0 %v789
        %v940 = vpop.f32.mrb[0].mxu0
        %v941 = vadd.f32 %v837, %v940
        %v942 = vpop.f32.mrb[0].mxu0
        %943 = vmatprep.mubr.f32.mxu0 0.0
        %944 = vmatmul.mubr.f32.gmra.mrb[0].mxu0 %v790
        %v945 = vpop.f32.mrb[0].mxu0
        %v946 = vadd.f32 %v837, %v945
        %v947 = vpop.f32.mrb[0].mxu0
        %948 = vmatprep.mubr.f32.mxu0 0.0
        %949 = vmatmul.mubr.f32.gmra.mrb[0].mxu0 %v791
        %v950 = vpop.f32.mrb[0].mxu0
        %v951 = vadd.f32 %v837, %v950
        %v952 = vpop.f32.mrb[0].mxu0
        %953 = vmatprep.mubr.f32.mxu0 0.0
        %954 = vmatmul.mubr.f32.gmra.mrb[0].mxu0 %v792
        %v955 = vpop.f32.mrb[0].mxu0
        %v956 = vadd.f32 %v837, %v955
        %v957 = vpop.f32.mrb[0].mxu0
        %958 = vmatprep.mubr.f32.mxu0 0.0
        %959 = vmatmul.mubr.f32.gmra.mrb[0].mxu0 %v793
        %v960 = vpop.f32.mrb[0].mxu0
        %v961 = vadd.f32 %v837, %v960
        %v962 = vpop.f32.mrb[0].mxu0
        %963 = vmatprep.mubr.f32.mxu0 0.0
        %964 = vmatmul.mubr.f32.gmra.mrb[0].mxu0 %v794
        %v965 = vpop.f32.mrb[0].mxu0
        %v966 = vadd.f32 %v837, %v965
        %v967 = vpop.f32.mrb[0].mxu0
        %968 = vmatprep.mubr.f32.mxu0 0.0
        %969 = vmatmul.mubr.f32.gmra.mrb[0].mxu0 %v795
        %v970 = vpop.f32.mrb[0].mxu0
        %v971 = vadd.f32 %v837, %v970
        %v972 = vpop.f32.mrb[0].mxu0
        %973 = vmatprep.mubr.f32.mxu0 0.0
        %974 = vmatmul.mubr.f32.gmra.mrb[0].mxu0 %v796
        %v975 = vpop.f32.mrb[0].mxu0
        %v976 = vadd.f32 %v837, %v975
        %v977 = vpop.f32.mrb[0].mxu0
        %978 = vmatprep.mubr.f32.mxu0 0.0
        %979 = vmatmul.mubr.f32.gmra.mrb[0].mxu0 %v797
        %v980 = vpop.f32.mrb[0].mxu0
        %v981 = vadd.f32 %v837, %v980
        %v982 = vpop.f32.mrb[0].mxu0
        %983 = vmatprep.mubr.f32.mxu0 0.0
        %984 = vmatmul.mubr.f32.gmra.mrb[0].mxu0 %v798
        %v985 = vpop.f32.mrb[0].mxu0
        %v986 = vadd.f32 %v837, %v985
        %v987 = vpop.f32.mrb[0].mxu0
        %988 = vmatprep.mubr.f32.mxu0 0.0
        %989 = vmatmul.mubr.f32.gmra.mrb[0].mxu0 %v799
        %v990 = vpop.f32.mrb[0].mxu0
        %v991 = vadd.f32 %v837, %v990
        %v992 = vpop.f32.mrb[0].mxu0
        %993 = vmatprep.mubr.f32.mxu0 0.0
        %994 = vmatmul.mubr.f32.gmra.mrb[0].mxu0 %v800
        %v995 = vpop.f32.mrb[0].mxu0
        %v996 = vadd.f32 %v837, %v995
        %v997 = vpop.f32.mrb[0].mxu0
        %998 = vmatprep.mubr.f32.mxu0 0.0
        %999 = vmatmul.mubr.f32.gmra.mrb[0].mxu0 %v801
        %v1000 = vpop.f32.mrb[0].mxu0
        %v1001 = vadd.f32 %v837, %v1000
        %v1002 = vpop.f32.mrb[0].mxu0
        %1003 = vmatprep.mubr.f32.mxu0 0.0
        %1004 = vmatmul.mubr.f32.gmra.mrb[0].mxu0 %v802
        %v1005 = vpop.f32.mrb[0].mxu0
        %v1006 = vadd.f32 %v837, %v1005
        %v1007 = vpop.f32.mrb[0].mxu0
        %1008 = vmatprep.mubr.f32.mxu0 0.0
        %1009 = vmatmul.mubr.f32.gmra.mrb[0].mxu0 %v803
        %v1010 = vpop.f32.mrb[0].mxu0
        %v1011 = vadd.f32 %v837, %v1010
        %v1012 = vpop.f32.mrb[0].mxu0
        %1013 = vmatprep.mubr.f32.mxu0 0.0
        %1014 = vmatmul.mubr.f32.gmra.mrb[0].mxu0 %v804
        %v1015 = vpop.f32.mrb[0].mxu0
        %v1016 = vadd.f32 %v837, %v1015
        %v1017 = vpop.f32.mrb[0].mxu0
        %1018 = vmatprep.mubr.f32.mxu0 0.0
        %1019 = vmatmul.mubr.f32.gmra.mrb[0].mxu0 %v805
        %v1020 = vpop.f32.mrb[0].mxu0
        %v1021 = vadd.f32 %v837, %v1020
        %v1022 = vpop.f32.mrb[0].mxu0
        %1023 = vmatprep.mubr.f32.mxu0 0.0
        %1024 = vmatmul.mubr.f32.gmra.mrb[0].mxu0 %v806
        %v1025 = vpop.f32.mrb[0].mxu0
        %v1026 = vadd.f32 %v837, %v1025
        %v1027 = vpop.f32.mrb[0].mxu0
        %1028 = vmatprep.mubr.f32.mxu0 0.0
        %1029 = vmatmul.mubr.f32.gmra.mrb[0].mxu0 %v807
        %v1030 = vpop.f32.mrb[0].mxu0
        %v1031 = vadd.f32 %v837, %v1030
        %v1032 = vpop.f32.mrb[0].mxu0
        %1033 = vmatprep.mubr.f32.mxu0 0.0
        %1034 = vmatmul.mubr.f32.gmra.mrb[0].mxu0 %v808
        %v1035 = vpop.f32.mrb[0].mxu0
        %v1036 = vadd.f32 %v837, %v1035
        %v1037 = vpop.f32.mrb[0].mxu0
        %1038 = vmatprep.mubr.f32.mxu0 0.0
        %1039 = vmatmul.mubr.f32.gmra.mrb[0].mxu0 %v809
        %v1040 = vpop.f32.mrb[0].mxu0
        %v1041 = vadd.f32 %v837, %v1040
        %v1042 = vpop.f32.mrb[0].mxu0
        %1043 = vmatprep.mubr.f32.mxu0 0.0
        %1044 = vmatmul.mubr.f32.gmra.mrb[0].mxu0 %v810
        %v1045 = vpop.f32.mrb[0].mxu0
        %v1046 = vadd.f32 %v837, %v1045
        %v1047 = vpop.f32.mrb[0].mxu0
        %1048 = vmatprep.mubr.f32.mxu0 0.0
        %1049 = vmatmul.mubr.f32.gmra.mrb[0].mxu0 %v811
        %v1050 = vpop.f32.mrb[0].mxu0
        %v1051 = vadd.f32 %v837, %v1050
        %v1052 = vpop.f32.mrb[0].mxu0
        %1053 = vmatprep.mubr.f32.mxu0 0.0
        %1054 = vmatmul.mubr.f32.gmra.mrb[0].mxu0 %v812
        %v1055 = vpop.f32.mrb[0].mxu0
        %v1056 = vadd.f32 %v837, %v1055
        %v1057 = vpop.f32.mrb[0].mxu0
        %1058 = vmatprep.mubr.f32.mxu0 0.0
        %1059 = vmatmul.mubr.f32.gmra.mrb[0].mxu0 %v813
        %v1060 = vpop.f32.mrb[0].mxu0
        %v1061 = vadd.f32 %v837, %v1060
        %v1062 = vpop.f32.mrb[0].mxu0
        %1063 = vdwg.mxu0
        %v1064 = vmax.f32 %v906, 0.0
        %v1065 = vmax.f32 %v911, 0.0
        %v1066 = vmax.f32 %v916, 0.0
        %v1067 = vmax.f32 %v921, 0.0
        %v1068 = vmax.f32 %v926, 0.0
        %v1069 = vmax.f32 %v931, 0.0
        %v1070 = vmax.f32 %v936, 0.0
        %v1071 = vmax.f32 %v941, 0.0
        %v1072 = vmax.f32 %v946, 0.0
        %v1073 = vmax.f32 %v951, 0.0
        %v1074 = vmax.f32 %v956, 0.0
        %v1075 = vmax.f32 %v961, 0.0
        %v1076 = vmax.f32 %v966, 0.0
        %v1077 = vmax.f32 %v971, 0.0
        %v1078 = vmax.f32 %v976, 0.0
        %v1079 = vmax.f32 %v981, 0.0
        %v1080 = vmax.f32 %v986, 0.0
        %v1081 = vmax.f32 %v991, 0.0
        %v1082 = vmax.f32 %v996, 0.0
        %v1083 = vmax.f32 %v1001, 0.0
        %v1084 = vmax.f32 %v1006, 0.0
        %v1085 = vmax.f32 %v1011, 0.0
        %v1086 = vmax.f32 %v1016, 0.0
        %v1087 = vmax.f32 %v1021, 0.0
        %v1088 = vmax.f32 %v1026, 0.0
        %v1089 = vmax.f32 %v1031, 0.0
        %v1090 = vmax.f32 %v1036, 0.0
        %v1091 = vmax.f32 %v1041, 0.0
        %v1092 = vmax.f32 %v1046, 0.0
        %v1093 = vmax.f32 %v1051, 0.0
        %v1094 = vmax.f32 %v1056, 0.0
        %v1095 = vmax.f32 %v1061, 0.0
        %s1096 = scalar_lea.vmem [#allocation5], 384
        %v1097 = vld [vmem:[%s1096] sm:$0xff]
        %v1098 = vld [vmem:[%s1096 + $0x8] sm:$0xff]
        %v1099 = vld [vmem:[%s1096 + $0x10] sm:$0xff]
        %v1100 = vld [vmem:[%s1096 + $0x18] sm:$0xff]
        %v1101 = vld [vmem:[%s1096 + $0x20] sm:$0xff]
        %v1102 = vld [vmem:[%s1096 + $0x28] sm:$0xff]
        %v1103 = vld [vmem:[%s1096 + $0x30] sm:$0xff]
        %v1104 = vld [vmem:[%s1096 + $0x38] sm:$0xff]
        %v1105 = vld [vmem:[%s1096 + $0x40] sm:$0xff]
        %v1106 = vld [vmem:[%s1096 + $0x48] sm:$0xff]
        %v1107 = vld [vmem:[%s1096 + $0x50] sm:$0xff]
        %v1108 = vld [vmem:[%s1096 + $0x58] sm:$0xff]
        %v1109 = vld [vmem:[%s1096 + $0x60] sm:$0xff]
        %v1110 = vld [vmem:[%s1096 + $0x68] sm:$0xff]
        %v1111 = vld [vmem:[%s1096 + $0x70] sm:$0xff]
        %v1112 = vld [vmem:[%s1096 + $0x78] sm:$0xff]
        %s1113 = scalar_lea.vmem [#allocation7], 3
        %v1114 = vld [vmem:[%s1113] sm:$0x1]
        %v1116 = vlaneseq
        %v1117 = vshrl.u32 %v1116, 7
        %v1118 = vsub.s32 0, %v1117
        %v1119 = vrot.slane %v1114, %v1118
        %1121 = vmatprep.subr.mxu0 0.0
        %1122 = vmatpush1.msra.mxu0 %v1097
        %1123 = vmatprep.subr.mxu0 0.0
        %1124 = vmatpush1.msra.mxu0 %v1098
        %1125 = vmatprep.subr.mxu0 0.0
        %1126 = vmatpush1.msra.mxu0 %v1099
        %1127 = vmatprep.subr.mxu0 0.0
        %1128 = vmatpush1.msra.mxu0 %v1100
        %1129 = vmatprep.subr.mxu0 0.0
        %1130 = vmatpush1.msra.mxu0 %v1101
        %1131 = vmatprep.subr.mxu0 0.0
        %1132 = vmatpush1.msra.mxu0 %v1102
        %1133 = vmatprep.subr.mxu0 0.0
        %1134 = vmatpush1.msra.mxu0 %v1103
        %1135 = vmatprep.subr.mxu0 0.0
        %1136 = vmatpush1.msra.mxu0 %v1104
        %1137 = vmatprep.subr.mxu0 0.0
        %1138 = vmatpush1.msra.mxu0 %v1105
        %1139 = vmatprep.subr.mxu0 0.0
        %1140 = vmatpush1.msra.mxu0 %v1106
        %1141 = vmatprep.subr.mxu0 0.0
        %1142 = vmatpush1.msra.mxu0 %v1107
        %1143 = vmatprep.subr.mxu0 0.0
        %1144 = vmatpush1.msra.mxu0 %v1108
        %1145 = vmatprep.subr.mxu0 0.0
        %1146 = vmatpush1.msra.mxu0 %v1109
        %1147 = vmatprep.subr.mxu0 0.0
        %1148 = vmatpush1.msra.mxu0 %v1110
        %1149 = vmatprep.subr.mxu0 0.0
        %1150 = vmatpush1.msra.mxu0 %v1111
        %1151 = vmatprep.subr.mxu0 0.0
        %1152 = vmatpush1.msra.mxu0 %v1112
        %1153 = vmatprep.subr.mxu0 0.0
        %1154 = vmatpush1.msra.mxu0 0.0
        %1155 = vmatprep.subr.mxu0 0.0
        %1156 = vmatpush1.msra.mxu0 0.0
        %1157 = vmatprep.subr.mxu0 0.0
        %1158 = vmatpush1.msra.mxu0 0.0
        %1159 = vmatprep.subr.mxu0 0.0
        %1160 = vmatpush1.msra.mxu0 0.0
        %1161 = vmatprep.subr.mxu0 0.0
        %1162 = vmatpush1.msra.mxu0 0.0
        %1163 = vmatprep.subr.mxu0 0.0
        %1164 = vmatpush1.msra.mxu0 0.0
        %1165 = vmatprep.subr.mxu0 0.0
        %1166 = vmatpush1.msra.mxu0 0.0
        %1167 = vmatprep.subr.mxu0 0.0
        %1168 = vmatpush1.msra.mxu0 0.0
        %1169 = vmatprep.subr.mxu0 0.0
        %1170 = vmatpush1.msra.mxu0 0.0
        %1171 = vmatprep.subr.mxu0 0.0
        %1172 = vmatpush1.msra.mxu0 0.0
        %1173 = vmatprep.subr.mxu0 0.0
        %1174 = vmatpush1.msra.mxu0 0.0
        %1175 = vmatprep.subr.mxu0 0.0
        %1176 = vmatpush1.msra.mxu0 0.0
        %1177 = vmatprep.subr.mxu0 0.0
        %1178 = vmatpush1.msra.mxu0 0.0
        %1179 = vmatprep.subr.mxu0 0.0
        %1180 = vmatpush1.msra.mxu0 0.0
        %1181 = vmatprep.subr.mxu0 0.0
        %1182 = vmatpush1.msra.mxu0 0.0
        %1183 = vmatprep.subr.mxu0 0.0
        %1184 = vmatpush1.msra.mxu0 0.0
        %1185 = vmatprep.mubr.f32.mxu0 0.0
        %1186 = vmatmul.mubr.f32.gmra.mrb[0].mxu0 %v1064
        %v1187 = vpop.f32.mrb[0].mxu0
        %v1188 = vadd.f32 %v1119, %v1187
        %v1189 = vpop.f32.mrb[0].mxu0
        %1190 = vmatprep.mubr.f32.mxu0 0.0
        %1191 = vmatmul.mubr.f32.gmra.mrb[0].mxu0 %v1065
        %v1192 = vpop.f32.mrb[0].mxu0
        %v1193 = vadd.f32 %v1119, %v1192
        %v1194 = vpop.f32.mrb[0].mxu0
        %1195 = vmatprep.mubr.f32.mxu0 0.0
        %1196 = vmatmul.mubr.f32.gmra.mrb[0].mxu0 %v1066
        %v1197 = vpop.f32.mrb[0].mxu0
        %v1198 = vadd.f32 %v1119, %v1197
        %v1199 = vpop.f32.mrb[0].mxu0
        %1200 = vmatprep.mubr.f32.mxu0 0.0
        %1201 = vmatmul.mubr.f32.gmra.mrb[0].mxu0 %v1067
        %v1202 = vpop.f32.mrb[0].mxu0
        %v1203 = vadd.f32 %v1119, %v1202
        %v1204 = vpop.f32.mrb[0].mxu0
        %1205 = vmatprep.mubr.f32.mxu0 0.0
        %1206 = vmatmul.mubr.f32.gmra.mrb[0].mxu0 %v1068
        %v1207 = vpop.f32.mrb[0].mxu0
        %v1208 = vadd.f32 %v1119, %v1207
        %v1209 = vpop.f32.mrb[0].mxu0
        %1210 = vmatprep.mubr.f32.mxu0 0.0
        %1211 = vmatmul.mubr.f32.gmra.mrb[0].mxu0 %v1069
        %v1212 = vpop.f32.mrb[0].mxu0
        %v1213 = vadd.f32 %v1119, %v1212
        %v1214 = vpop.f32.mrb[0].mxu0
        %1215 = vmatprep.mubr.f32.mxu0 0.0
        %1216 = vmatmul.mubr.f32.gmra.mrb[0].mxu0 %v1070
        %v1217 = vpop.f32.mrb[0].mxu0
        %v1218 = vadd.f32 %v1119, %v1217
        %v1219 = vpop.f32.mrb[0].mxu0
        %1220 = vmatprep.mubr.f32.mxu0 0.0
        %1221 = vmatmul.mubr.f32.gmra.mrb[0].mxu0 %v1071
        %v1222 = vpop.f32.mrb[0].mxu0
        %v1223 = vadd.f32 %v1119, %v1222
        %v1224 = vpop.f32.mrb[0].mxu0
        %1225 = vmatprep.mubr.f32.mxu0 0.0
        %1226 = vmatmul.mubr.f32.gmra.mrb[0].mxu0 %v1072
        %v1227 = vpop.f32.mrb[0].mxu0
        %v1228 = vadd.f32 %v1119, %v1227
        %v1229 = vpop.f32.mrb[0].mxu0
        %1230 = vmatprep.mubr.f32.mxu0 0.0
        %1231 = vmatmul.mubr.f32.gmra.mrb[0].mxu0 %v1073
        %v1232 = vpop.f32.mrb[0].mxu0
        %v1233 = vadd.f32 %v1119, %v1232
        %v1234 = vpop.f32.mrb[0].mxu0
        %1235 = vmatprep.mubr.f32.mxu0 0.0
        %1236 = vmatmul.mubr.f32.gmra.mrb[0].mxu0 %v1074
        %v1237 = vpop.f32.mrb[0].mxu0
        %v1238 = vadd.f32 %v1119, %v1237
        %v1239 = vpop.f32.mrb[0].mxu0
        %1240 = vmatprep.mubr.f32.mxu0 0.0
        %1241 = vmatmul.mubr.f32.gmra.mrb[0].mxu0 %v1075
        %v1242 = vpop.f32.mrb[0].mxu0
        %v1243 = vadd.f32 %v1119, %v1242
        %v1244 = vpop.f32.mrb[0].mxu0
        %1245 = vmatprep.mubr.f32.mxu0 0.0
        %1246 = vmatmul.mubr.f32.gmra.mrb[0].mxu0 %v1076
        %v1247 = vpop.f32.mrb[0].mxu0
        %v1248 = vadd.f32 %v1119, %v1247
        %v1249 = vpop.f32.mrb[0].mxu0
        %1250 = vmatprep.mubr.f32.mxu0 0.0
        %1251 = vmatmul.mubr.f32.gmra.mrb[0].mxu0 %v1077
        %v1252 = vpop.f32.mrb[0].mxu0
        %v1253 = vadd.f32 %v1119, %v1252
        %v1254 = vpop.f32.mrb[0].mxu0
        %1255 = vmatprep.mubr.f32.mxu0 0.0
        %1256 = vmatmul.mubr.f32.gmra.mrb[0].mxu0 %v1078
        %v1257 = vpop.f32.mrb[0].mxu0
        %v1258 = vadd.f32 %v1119, %v1257
        %v1259 = vpop.f32.mrb[0].mxu0
        %1260 = vmatprep.mubr.f32.mxu0 0.0
        %1261 = vmatmul.mubr.f32.gmra.mrb[0].mxu0 %v1079
        %v1262 = vpop.f32.mrb[0].mxu0
        %v1263 = vadd.f32 %v1119, %v1262
        %v1264 = vpop.f32.mrb[0].mxu0
        %1265 = vmatprep.mubr.f32.mxu0 0.0
        %1266 = vmatmul.mubr.f32.gmra.mrb[0].mxu0 %v1080
        %v1267 = vpop.f32.mrb[0].mxu0
        %v1268 = vadd.f32 %v1119, %v1267
        %v1269 = vpop.f32.mrb[0].mxu0
        %1270 = vmatprep.mubr.f32.mxu0 0.0
        %1271 = vmatmul.mubr.f32.gmra.mrb[0].mxu0 %v1081
        %v1272 = vpop.f32.mrb[0].mxu0
        %v1273 = vadd.f32 %v1119, %v1272
        %v1274 = vpop.f32.mrb[0].mxu0
        %1275 = vmatprep.mubr.f32.mxu0 0.0
        %1276 = vmatmul.mubr.f32.gmra.mrb[0].mxu0 %v1082
        %v1277 = vpop.f32.mrb[0].mxu0
        %v1278 = vadd.f32 %v1119, %v1277
        %v1279 = vpop.f32.mrb[0].mxu0
        %1280 = vmatprep.mubr.f32.mxu0 0.0
        %1281 = vmatmul.mubr.f32.gmra.mrb[0].mxu0 %v1083
        %v1282 = vpop.f32.mrb[0].mxu0
        %v1283 = vadd.f32 %v1119, %v1282
        %v1284 = vpop.f32.mrb[0].mxu0
        %1285 = vmatprep.mubr.f32.mxu0 0.0
        %1286 = vmatmul.mubr.f32.gmra.mrb[0].mxu0 %v1084
        %v1287 = vpop.f32.mrb[0].mxu0
        %v1288 = vadd.f32 %v1119, %v1287
        %v1289 = vpop.f32.mrb[0].mxu0
        %1290 = vmatprep.mubr.f32.mxu0 0.0
        %1291 = vmatmul.mubr.f32.gmra.mrb[0].mxu0 %v1085
        %v1292 = vpop.f32.mrb[0].mxu0
        %v1293 = vadd.f32 %v1119, %v1292
        %v1294 = vpop.f32.mrb[0].mxu0
        %1295 = vmatprep.mubr.f32.mxu0 0.0
        %1296 = vmatmul.mubr.f32.gmra.mrb[0].mxu0 %v1086
        %v1297 = vpop.f32.mrb[0].mxu0
        %v1298 = vadd.f32 %v1119, %v1297
        %v1299 = vpop.f32.mrb[0].mxu0
        %1300 = vmatprep.mubr.f32.mxu0 0.0
        %1301 = vmatmul.mubr.f32.gmra.mrb[0].mxu0 %v1087
        %v1302 = vpop.f32.mrb[0].mxu0
        %v1303 = vadd.f32 %v1119, %v1302
        %v1304 = vpop.f32.mrb[0].mxu0
        %1305 = vmatprep.mubr.f32.mxu0 0.0
        %1306 = vmatmul.mubr.f32.gmra.mrb[0].mxu0 %v1088
        %v1307 = vpop.f32.mrb[0].mxu0
        %v1308 = vadd.f32 %v1119, %v1307
        %v1309 = vpop.f32.mrb[0].mxu0
        %1310 = vmatprep.mubr.f32.mxu0 0.0
        %1311 = vmatmul.mubr.f32.gmra.mrb[0].mxu0 %v1089
        %v1312 = vpop.f32.mrb[0].mxu0
        %v1313 = vadd.f32 %v1119, %v1312
        %v1314 = vpop.f32.mrb[0].mxu0
        %1315 = vmatprep.mubr.f32.mxu0 0.0
        %1316 = vmatmul.mubr.f32.gmra.mrb[0].mxu0 %v1090
        %v1317 = vpop.f32.mrb[0].mxu0
        %v1318 = vadd.f32 %v1119, %v1317
        %v1319 = vpop.f32.mrb[0].mxu0
        %1320 = vmatprep.mubr.f32.mxu0 0.0
        %1321 = vmatmul.mubr.f32.gmra.mrb[0].mxu0 %v1091
        %v1322 = vpop.f32.mrb[0].mxu0
        %v1323 = vadd.f32 %v1119, %v1322
        %v1324 = vpop.f32.mrb[0].mxu0
        %1325 = vmatprep.mubr.f32.mxu0 0.0
        %1326 = vmatmul.mubr.f32.gmra.mrb[0].mxu0 %v1092
        %v1327 = vpop.f32.mrb[0].mxu0
        %v1328 = vadd.f32 %v1119, %v1327
        %v1329 = vpop.f32.mrb[0].mxu0
        %1330 = vmatprep.mubr.f32.mxu0 0.0
        %1331 = vmatmul.mubr.f32.gmra.mrb[0].mxu0 %v1093
        %v1332 = vpop.f32.mrb[0].mxu0
        %v1333 = vadd.f32 %v1119, %v1332
        %v1334 = vpop.f32.mrb[0].mxu0
        %1335 = vmatprep.mubr.f32.mxu0 0.0
        %1336 = vmatmul.mubr.f32.gmra.mrb[0].mxu0 %v1094
        %v1337 = vpop.f32.mrb[0].mxu0
        %v1338 = vadd.f32 %v1119, %v1337
        %v1339 = vpop.f32.mrb[0].mxu0
        %1340 = vmatprep.mubr.f32.mxu0 0.0
        %1341 = vmatmul.mubr.f32.gmra.mrb[0].mxu0 %v1095
        %v1342 = vpop.f32.mrb[0].mxu0
        %v1343 = vadd.f32 %v1119, %v1342
        %v1344 = vpop.f32.mrb[0].mxu0
        %1345 = vdwg.mxu0
        %s1346 = scalar_lea.vmem [#allocation5], 512
        %v1347 = vld [vmem:[%s1346] sm:$0xff]
        %v1348 = vld [vmem:[%s1346 + $0x8] sm:$0xff]
        %v1349 = vld [vmem:[%s1346 + $0x10] sm:$0xff]
        %v1350 = vld [vmem:[%s1346 + $0x18] sm:$0xff]
        %v1351 = vld [vmem:[%s1346 + $0x20] sm:$0xff]
        %v1352 = vld [vmem:[%s1346 + $0x28] sm:$0xff]
        %v1353 = vld [vmem:[%s1346 + $0x30] sm:$0xff]
        %v1354 = vld [vmem:[%s1346 + $0x38] sm:$0xff]
        %v1355 = vld [vmem:[%s1346 + $0x40] sm:$0xff]
        %v1356 = vld [vmem:[%s1346 + $0x48] sm:$0xff]
        %v1357 = vld [vmem:[%s1346 + $0x50] sm:$0xff]
        %v1358 = vld [vmem:[%s1346 + $0x58] sm:$0xff]
        %v1359 = vld [vmem:[%s1346 + $0x60] sm:$0xff]
        %v1360 = vld [vmem:[%s1346 + $0x68] sm:$0xff]
        %v1361 = vld [vmem:[%s1346 + $0x70] sm:$0xff]
        %v1362 = vld [vmem:[%s1346 + $0x78] sm:$0xff]
        %s1363 = scalar_lea.vmem [#allocation7], 4
        %v1364 = vld [vmem:[%s1363] sm:$0x1]
        %v1366 = vlaneseq
        %v1367 = vshrl.u32 %v1366, 7
        %v1368 = vsub.s32 0, %v1367
        %v1369 = vrot.slane %v1364, %v1368
        %1371 = vmatprep.subr.mxu0 0.0
        %1372 = vmatpush1.msra.mxu0 %v1347
        %1373 = vmatprep.subr.mxu0 0.0
        %1374 = vmatpush1.msra.mxu0 %v1348
        %1375 = vmatprep.subr.mxu0 0.0
        %1376 = vmatpush1.msra.mxu0 %v1349
        %1377 = vmatprep.subr.mxu0 0.0
        %1378 = vmatpush1.msra.mxu0 %v1350
        %1379 = vmatprep.subr.mxu0 0.0
        %1380 = vmatpush1.msra.mxu0 %v1351
        %1381 = vmatprep.subr.mxu0 0.0
        %1382 = vmatpush1.msra.mxu0 %v1352
        %1383 = vmatprep.subr.mxu0 0.0
        %1384 = vmatpush1.msra.mxu0 %v1353
        %1385 = vmatprep.subr.mxu0 0.0
        %1386 = vmatpush1.msra.mxu0 %v1354
        %1387 = vmatprep.subr.mxu0 0.0
        %1388 = vmatpush1.msra.mxu0 %v1355
        %1389 = vmatprep.subr.mxu0 0.0
        %1390 = vmatpush1.msra.mxu0 %v1356
        %1391 = vmatprep.subr.mxu0 0.0
        %1392 = vmatpush1.msra.mxu0 %v1357
        %1393 = vmatprep.subr.mxu0 0.0
        %1394 = vmatpush1.msra.mxu0 %v1358
        %1395 = vmatprep.subr.mxu0 0.0
        %1396 = vmatpush1.msra.mxu0 %v1359
        %1397 = vmatprep.subr.mxu0 0.0
        %1398 = vmatpush1.msra.mxu0 %v1360
        %1399 = vmatprep.subr.mxu0 0.0
        %1400 = vmatpush1.msra.mxu0 %v1361
        %1401 = vmatprep.subr.mxu0 0.0
        %1402 = vmatpush1.msra.mxu0 %v1362
        %1403 = vmatprep.subr.mxu0 0.0
        %1404 = vmatpush1.msra.mxu0 0.0
        %1405 = vmatprep.subr.mxu0 0.0
        %1406 = vmatpush1.msra.mxu0 0.0
        %1407 = vmatprep.subr.mxu0 0.0
        %1408 = vmatpush1.msra.mxu0 0.0
        %1409 = vmatprep.subr.mxu0 0.0
        %1410 = vmatpush1.msra.mxu0 0.0
        %1411 = vmatprep.subr.mxu0 0.0
        %1412 = vmatpush1.msra.mxu0 0.0
        %1413 = vmatprep.subr.mxu0 0.0
        %1414 = vmatpush1.msra.mxu0 0.0
        %1415 = vmatprep.subr.mxu0 0.0
        %1416 = vmatpush1.msra.mxu0 0.0
        %1417 = vmatprep.subr.mxu0 0.0
        %1418 = vmatpush1.msra.mxu0 0.0
        %1419 = vmatprep.subr.mxu0 0.0
        %1420 = vmatpush1.msra.mxu0 0.0
        %1421 = vmatprep.subr.mxu0 0.0
        %1422 = vmatpush1.msra.mxu0 0.0
        %1423 = vmatprep.subr.mxu0 0.0
        %1424 = vmatpush1.msra.mxu0 0.0
        %1425 = vmatprep.subr.mxu0 0.0
        %1426 = vmatpush1.msra.mxu0 0.0
        %1427 = vmatprep.subr.mxu0 0.0
        %1428 = vmatpush1.msra.mxu0 0.0
        %1429 = vmatprep.subr.mxu0 0.0
        %1430 = vmatpush1.msra.mxu0 0.0
        %1431 = vmatprep.subr.mxu0 0.0
        %1432 = vmatpush1.msra.mxu0 0.0
        %1433 = vmatprep.subr.mxu0 0.0
        %1434 = vmatpush1.msra.mxu0 0.0
        %1435 = vmatprep.mubr.f32.mxu0 0.0
        %1436 = vmatmul.mubr.f32.gmra.mrb[0].mxu0 %v1188
        %v1437 = vpop.f32.mrb[0].mxu0
        %v1438 = vadd.f32 %v1369, %v1437
        %v1439 = vpop.f32.mrb[0].mxu0
        %1440 = vmatprep.mubr.f32.mxu0 0.0
        %1441 = vmatmul.mubr.f32.gmra.mrb[0].mxu0 %v1193
        %v1442 = vpop.f32.mrb[0].mxu0
        %v1443 = vadd.f32 %v1369, %v1442
        %v1444 = vpop.f32.mrb[0].mxu0
        %1445 = vmatprep.mubr.f32.mxu0 0.0
        %1446 = vmatmul.mubr.f32.gmra.mrb[0].mxu0 %v1198
        %v1447 = vpop.f32.mrb[0].mxu0
        %v1448 = vadd.f32 %v1369, %v1447
        %v1449 = vpop.f32.mrb[0].mxu0
        %1450 = vmatprep.mubr.f32.mxu0 0.0
        %1451 = vmatmul.mubr.f32.gmra.mrb[0].mxu0 %v1203
        %v1452 = vpop.f32.mrb[0].mxu0
        %v1453 = vadd.f32 %v1369, %v1452
        %v1454 = vpop.f32.mrb[0].mxu0
        %1455 = vmatprep.mubr.f32.mxu0 0.0
        %1456 = vmatmul.mubr.f32.gmra.mrb[0].mxu0 %v1208
        %v1457 = vpop.f32.mrb[0].mxu0
        %v1458 = vadd.f32 %v1369, %v1457
        %v1459 = vpop.f32.mrb[0].mxu0
        %1460 = vmatprep.mubr.f32.mxu0 0.0
        %1461 = vmatmul.mubr.f32.gmra.mrb[0].mxu0 %v1213
        %v1462 = vpop.f32.mrb[0].mxu0
        %v1463 = vadd.f32 %v1369, %v1462
        %v1464 = vpop.f32.mrb[0].mxu0
        %1465 = vmatprep.mubr.f32.mxu0 0.0
        %1466 = vmatmul.mubr.f32.gmra.mrb[0].mxu0 %v1218
        %v1467 = vpop.f32.mrb[0].mxu0
        %v1468 = vadd.f32 %v1369, %v1467
        %v1469 = vpop.f32.mrb[0].mxu0
        %1470 = vmatprep.mubr.f32.mxu0 0.0
        %1471 = vmatmul.mubr.f32.gmra.mrb[0].mxu0 %v1223
        %v1472 = vpop.f32.mrb[0].mxu0
        %v1473 = vadd.f32 %v1369, %v1472
        %v1474 = vpop.f32.mrb[0].mxu0
        %1475 = vmatprep.mubr.f32.mxu0 0.0
        %1476 = vmatmul.mubr.f32.gmra.mrb[0].mxu0 %v1228
        %v1477 = vpop.f32.mrb[0].mxu0
        %v1478 = vadd.f32 %v1369, %v1477
        %v1479 = vpop.f32.mrb[0].mxu0
        %1480 = vmatprep.mubr.f32.mxu0 0.0
        %1481 = vmatmul.mubr.f32.gmra.mrb[0].mxu0 %v1233
        %v1482 = vpop.f32.mrb[0].mxu0
        %v1483 = vadd.f32 %v1369, %v1482
        %v1484 = vpop.f32.mrb[0].mxu0
        %1485 = vmatprep.mubr.f32.mxu0 0.0
        %1486 = vmatmul.mubr.f32.gmra.mrb[0].mxu0 %v1238
        %v1487 = vpop.f32.mrb[0].mxu0
        %v1488 = vadd.f32 %v1369, %v1487
        %v1489 = vpop.f32.mrb[0].mxu0
        %1490 = vmatprep.mubr.f32.mxu0 0.0
        %1491 = vmatmul.mubr.f32.gmra.mrb[0].mxu0 %v1243
        %v1492 = vpop.f32.mrb[0].mxu0
        %v1493 = vadd.f32 %v1369, %v1492
        %v1494 = vpop.f32.mrb[0].mxu0
        %1495 = vmatprep.mubr.f32.mxu0 0.0
        %1496 = vmatmul.mubr.f32.gmra.mrb[0].mxu0 %v1248
        %v1497 = vpop.f32.mrb[0].mxu0
        %v1498 = vadd.f32 %v1369, %v1497
        %v1499 = vpop.f32.mrb[0].mxu0
        %1500 = vmatprep.mubr.f32.mxu0 0.0
        %1501 = vmatmul.mubr.f32.gmra.mrb[0].mxu0 %v1253
        %v1502 = vpop.f32.mrb[0].mxu0
        %v1503 = vadd.f32 %v1369, %v1502
        %v1504 = vpop.f32.mrb[0].mxu0
        %1505 = vmatprep.mubr.f32.mxu0 0.0
        %1506 = vmatmul.mubr.f32.gmra.mrb[0].mxu0 %v1258
        %v1507 = vpop.f32.mrb[0].mxu0
        %v1508 = vadd.f32 %v1369, %v1507
        %v1509 = vpop.f32.mrb[0].mxu0
        %1510 = vmatprep.mubr.f32.mxu0 0.0
        %1511 = vmatmul.mubr.f32.gmra.mrb[0].mxu0 %v1263
        %v1512 = vpop.f32.mrb[0].mxu0
        %v1513 = vadd.f32 %v1369, %v1512
        %v1514 = vpop.f32.mrb[0].mxu0
        %1515 = vmatprep.mubr.f32.mxu0 0.0
        %1516 = vmatmul.mubr.f32.gmra.mrb[0].mxu0 %v1268
        %v1517 = vpop.f32.mrb[0].mxu0
        %v1518 = vadd.f32 %v1369, %v1517
        %v1519 = vpop.f32.mrb[0].mxu0
        %1520 = vmatprep.mubr.f32.mxu0 0.0
        %1521 = vmatmul.mubr.f32.gmra.mrb[0].mxu0 %v1273
        %v1522 = vpop.f32.mrb[0].mxu0
        %v1523 = vadd.f32 %v1369, %v1522
        %v1524 = vpop.f32.mrb[0].mxu0
        %1525 = vmatprep.mubr.f32.mxu0 0.0
        %1526 = vmatmul.mubr.f32.gmra.mrb[0].mxu0 %v1278
        %v1527 = vpop.f32.mrb[0].mxu0
        %v1528 = vadd.f32 %v1369, %v1527
        %v1529 = vpop.f32.mrb[0].mxu0
        %1530 = vmatprep.mubr.f32.mxu0 0.0
        %1531 = vmatmul.mubr.f32.gmra.mrb[0].mxu0 %v1283
        %v1532 = vpop.f32.mrb[0].mxu0
        %v1533 = vadd.f32 %v1369, %v1532
        %v1534 = vpop.f32.mrb[0].mxu0
        %1535 = vmatprep.mubr.f32.mxu0 0.0
        %1536 = vmatmul.mubr.f32.gmra.mrb[0].mxu0 %v1288
        %v1537 = vpop.f32.mrb[0].mxu0
        %v1538 = vadd.f32 %v1369, %v1537
        %v1539 = vpop.f32.mrb[0].mxu0
        %1540 = vmatprep.mubr.f32.mxu0 0.0
        %1541 = vmatmul.mubr.f32.gmra.mrb[0].mxu0 %v1293
        %v1542 = vpop.f32.mrb[0].mxu0
        %v1543 = vadd.f32 %v1369, %v1542
        %v1544 = vpop.f32.mrb[0].mxu0
        %1545 = vmatprep.mubr.f32.mxu0 0.0
        %1546 = vmatmul.mubr.f32.gmra.mrb[0].mxu0 %v1298
        %v1547 = vpop.f32.mrb[0].mxu0
        %v1548 = vadd.f32 %v1369, %v1547
        %v1549 = vpop.f32.mrb[0].mxu0
        %1550 = vmatprep.mubr.f32.mxu0 0.0
        %1551 = vmatmul.mubr.f32.gmra.mrb[0].mxu0 %v1303
        %v1552 = vpop.f32.mrb[0].mxu0
        %v1553 = vadd.f32 %v1369, %v1552
        %v1554 = vpop.f32.mrb[0].mxu0
        %1555 = vmatprep.mubr.f32.mxu0 0.0
        %1556 = vmatmul.mubr.f32.gmra.mrb[0].mxu0 %v1308
        %v1557 = vpop.f32.mrb[0].mxu0
        %v1558 = vadd.f32 %v1369, %v1557
        %v1559 = vpop.f32.mrb[0].mxu0
        %1560 = vmatprep.mubr.f32.mxu0 0.0
        %1561 = vmatmul.mubr.f32.gmra.mrb[0].mxu0 %v1313
        %v1562 = vpop.f32.mrb[0].mxu0
        %v1563 = vadd.f32 %v1369, %v1562
        %v1564 = vpop.f32.mrb[0].mxu0
        %1565 = vmatprep.mubr.f32.mxu0 0.0
        %1566 = vmatmul.mubr.f32.gmra.mrb[0].mxu0 %v1318
        %v1567 = vpop.f32.mrb[0].mxu0
        %v1568 = vadd.f32 %v1369, %v1567
        %v1569 = vpop.f32.mrb[0].mxu0
        %1570 = vmatprep.mubr.f32.mxu0 0.0
        %1571 = vmatmul.mubr.f32.gmra.mrb[0].mxu0 %v1323
        %v1572 = vpop.f32.mrb[0].mxu0
        %v1573 = vadd.f32 %v1369, %v1572
        %v1574 = vpop.f32.mrb[0].mxu0
        %1575 = vmatprep.mubr.f32.mxu0 0.0
        %1576 = vmatmul.mubr.f32.gmra.mrb[0].mxu0 %v1328
        %v1577 = vpop.f32.mrb[0].mxu0
        %v1578 = vadd.f32 %v1369, %v1577
        %v1579 = vpop.f32.mrb[0].mxu0
        %1580 = vmatprep.mubr.f32.mxu0 0.0
        %1581 = vmatmul.mubr.f32.gmra.mrb[0].mxu0 %v1333
        %v1582 = vpop.f32.mrb[0].mxu0
        %v1583 = vadd.f32 %v1369, %v1582
        %v1584 = vpop.f32.mrb[0].mxu0
        %1585 = vmatprep.mubr.f32.mxu0 0.0
        %1586 = vmatmul.mubr.f32.gmra.mrb[0].mxu0 %v1338
        %v1587 = vpop.f32.mrb[0].mxu0
        %v1588 = vadd.f32 %v1369, %v1587
        %v1589 = vpop.f32.mrb[0].mxu0
        %1590 = vmatprep.mubr.f32.mxu0 0.0
        %1591 = vmatmul.mubr.f32.gmra.mrb[0].mxu0 %v1343
        %v1592 = vpop.f32.mrb[0].mxu0
        %v1593 = vadd.f32 %v1369, %v1592
        %v1594 = vpop.f32.mrb[0].mxu0
        %1595 = vdwg.mxu0
        %v1596 = vmax.f32 %v1438, 0.0
        %v1597 = vmax.f32 %v1443, 0.0
        %v1598 = vmax.f32 %v1448, 0.0
        %v1599 = vmax.f32 %v1453, 0.0
        %v1600 = vmax.f32 %v1458, 0.0
        %v1601 = vmax.f32 %v1463, 0.0
        %v1602 = vmax.f32 %v1468, 0.0
        %v1603 = vmax.f32 %v1473, 0.0
        %v1604 = vmax.f32 %v1478, 0.0
        %v1605 = vmax.f32 %v1483, 0.0
        %v1606 = vmax.f32 %v1488, 0.0
        %v1607 = vmax.f32 %v1493, 0.0
        %v1608 = vmax.f32 %v1498, 0.0
        %v1609 = vmax.f32 %v1503, 0.0
        %v1610 = vmax.f32 %v1508, 0.0
        %v1611 = vmax.f32 %v1513, 0.0
        %v1612 = vmax.f32 %v1518, 0.0
        %v1613 = vmax.f32 %v1523, 0.0
        %v1614 = vmax.f32 %v1528, 0.0
        %v1615 = vmax.f32 %v1533, 0.0
        %v1616 = vmax.f32 %v1538, 0.0
        %v1617 = vmax.f32 %v1543, 0.0
        %v1618 = vmax.f32 %v1548, 0.0
        %v1619 = vmax.f32 %v1553, 0.0
        %v1620 = vmax.f32 %v1558, 0.0
        %v1621 = vmax.f32 %v1563, 0.0
        %v1622 = vmax.f32 %v1568, 0.0
        %v1623 = vmax.f32 %v1573, 0.0
        %v1624 = vmax.f32 %v1578, 0.0
        %v1625 = vmax.f32 %v1583, 0.0
        %v1626 = vmax.f32 %v1588, 0.0
        %v1627 = vmax.f32 %v1593, 0.0
        %s1628 = scalar_lea.vmem [#allocation5], 640
        %v1629 = vld [vmem:[%s1628] sm:$0xff]
        %v1630 = vld [vmem:[%s1628 + $0x8] sm:$0xff]
        %v1631 = vld [vmem:[%s1628 + $0x10] sm:$0xff]
        %v1632 = vld [vmem:[%s1628 + $0x18] sm:$0xff]
        %v1633 = vld [vmem:[%s1628 + $0x20] sm:$0xff]
        %v1634 = vld [vmem:[%s1628 + $0x28] sm:$0xff]
        %v1635 = vld [vmem:[%s1628 + $0x30] sm:$0xff]
        %v1636 = vld [vmem:[%s1628 + $0x38] sm:$0xff]
        %v1637 = vld [vmem:[%s1628 + $0x40] sm:$0xff]
        %v1638 = vld [vmem:[%s1628 + $0x48] sm:$0xff]
        %v1639 = vld [vmem:[%s1628 + $0x50] sm:$0xff]
        %v1640 = vld [vmem:[%s1628 + $0x58] sm:$0xff]
        %v1641 = vld [vmem:[%s1628 + $0x60] sm:$0xff]
        %v1642 = vld [vmem:[%s1628 + $0x68] sm:$0xff]
        %v1643 = vld [vmem:[%s1628 + $0x70] sm:$0xff]
        %v1644 = vld [vmem:[%s1628 + $0x78] sm:$0xff]
        %s1645 = scalar_lea.vmem [#allocation7], 5
        %v1646 = vld [vmem:[%s1645] sm:$0x1]
        %v1648 = vlaneseq
        %v1649 = vshrl.u32 %v1648, 7
        %v1650 = vsub.s32 0, %v1649
        %v1651 = vrot.slane %v1646, %v1650
        %1653 = vmatprep.subr.mxu0 0.0
        %1654 = vmatpush1.msra.mxu0 %v1629
        %1655 = vmatprep.subr.mxu0 0.0
        %1656 = vmatpush1.msra.mxu0 %v1630
        %1657 = vmatprep.subr.mxu0 0.0
        %1658 = vmatpush1.msra.mxu0 %v1631
        %1659 = vmatprep.subr.mxu0 0.0
        %1660 = vmatpush1.msra.mxu0 %v1632
        %1661 = vmatprep.subr.mxu0 0.0
        %1662 = vmatpush1.msra.mxu0 %v1633
        %1663 = vmatprep.subr.mxu0 0.0
        %1664 = vmatpush1.msra.mxu0 %v1634
        %1665 = vmatprep.subr.mxu0 0.0
        %1666 = vmatpush1.msra.mxu0 %v1635
        %1667 = vmatprep.subr.mxu0 0.0
        %1668 = vmatpush1.msra.mxu0 %v1636
        %1669 = vmatprep.subr.mxu0 0.0
        %1670 = vmatpush1.msra.mxu0 %v1637
        %1671 = vmatprep.subr.mxu0 0.0
        %1672 = vmatpush1.msra.mxu0 %v1638
        %1673 = vmatprep.subr.mxu0 0.0
        %1674 = vmatpush1.msra.mxu0 %v1639
        %1675 = vmatprep.subr.mxu0 0.0
        %1676 = vmatpush1.msra.mxu0 %v1640
        %1677 = vmatprep.subr.mxu0 0.0
        %1678 = vmatpush1.msra.mxu0 %v1641
        %1679 = vmatprep.subr.mxu0 0.0
        %1680 = vmatpush1.msra.mxu0 %v1642
        %1681 = vmatprep.subr.mxu0 0.0
        %1682 = vmatpush1.msra.mxu0 %v1643
        %1683 = vmatprep.subr.mxu0 0.0
        %1684 = vmatpush1.msra.mxu0 %v1644
        %1685 = vmatprep.subr.mxu0 0.0
        %1686 = vmatpush1.msra.mxu0 0.0
        %1687 = vmatprep.subr.mxu0 0.0
        %1688 = vmatpush1.msra.mxu0 0.0
        %1689 = vmatprep.subr.mxu0 0.0
        %1690 = vmatpush1.msra.mxu0 0.0
        %1691 = vmatprep.subr.mxu0 0.0
        %1692 = vmatpush1.msra.mxu0 0.0
        %1693 = vmatprep.subr.mxu0 0.0
        %1694 = vmatpush1.msra.mxu0 0.0
        %1695 = vmatprep.subr.mxu0 0.0
        %1696 = vmatpush1.msra.mxu0 0.0
        %1697 = vmatprep.subr.mxu0 0.0
        %1698 = vmatpush1.msra.mxu0 0.0
        %1699 = vmatprep.subr.mxu0 0.0
        %1700 = vmatpush1.msra.mxu0 0.0
        %1701 = vmatprep.subr.mxu0 0.0
        %1702 = vmatpush1.msra.mxu0 0.0
        %1703 = vmatprep.subr.mxu0 0.0
        %1704 = vmatpush1.msra.mxu0 0.0
        %1705 = vmatprep.subr.mxu0 0.0
        %1706 = vmatpush1.msra.mxu0 0.0
        %1707 = vmatprep.subr.mxu0 0.0
        %1708 = vmatpush1.msra.mxu0 0.0
        %1709 = vmatprep.subr.mxu0 0.0
        %1710 = vmatpush1.msra.mxu0 0.0
        %1711 = vmatprep.subr.mxu0 0.0
        %1712 = vmatpush1.msra.mxu0 0.0
        %1713 = vmatprep.subr.mxu0 0.0
        %1714 = vmatpush1.msra.mxu0 0.0
        %1715 = vmatprep.subr.mxu0 0.0
        %1716 = vmatpush1.msra.mxu0 0.0
        %1717 = vmatprep.mubr.f32.mxu0 0.0
        %1718 = vmatmul.mubr.f32.gmra.mrb[0].mxu0 %v1596
        %v1719 = vpop.f32.mrb[0].mxu0
        %v1720 = vadd.f32 %v1651, %v1719
        %v1721 = vpop.f32.mrb[0].mxu0
        %1722 = vmatprep.mubr.f32.mxu0 0.0
        %1723 = vmatmul.mubr.f32.gmra.mrb[0].mxu0 %v1597
        %v1724 = vpop.f32.mrb[0].mxu0
        %v1725 = vadd.f32 %v1651, %v1724
        %v1726 = vpop.f32.mrb[0].mxu0
        %1727 = vmatprep.mubr.f32.mxu0 0.0
        %1728 = vmatmul.mubr.f32.gmra.mrb[0].mxu0 %v1598
        %v1729 = vpop.f32.mrb[0].mxu0
        %v1730 = vadd.f32 %v1651, %v1729
        %v1731 = vpop.f32.mrb[0].mxu0
        %1732 = vmatprep.mubr.f32.mxu0 0.0
        %1733 = vmatmul.mubr.f32.gmra.mrb[0].mxu0 %v1599
        %v1734 = vpop.f32.mrb[0].mxu0
        %v1735 = vadd.f32 %v1651, %v1734
        %v1736 = vpop.f32.mrb[0].mxu0
        %1737 = vmatprep.mubr.f32.mxu0 0.0
        %1738 = vmatmul.mubr.f32.gmra.mrb[0].mxu0 %v1600
        %v1739 = vpop.f32.mrb[0].mxu0
        %v1740 = vadd.f32 %v1651, %v1739
        %v1741 = vpop.f32.mrb[0].mxu0
        %1742 = vmatprep.mubr.f32.mxu0 0.0
        %1743 = vmatmul.mubr.f32.gmra.mrb[0].mxu0 %v1601
        %v1744 = vpop.f32.mrb[0].mxu0
        %v1745 = vadd.f32 %v1651, %v1744
        %v1746 = vpop.f32.mrb[0].mxu0
        %1747 = vmatprep.mubr.f32.mxu0 0.0
        %1748 = vmatmul.mubr.f32.gmra.mrb[0].mxu0 %v1602
        %v1749 = vpop.f32.mrb[0].mxu0
        %v1750 = vadd.f32 %v1651, %v1749
        %v1751 = vpop.f32.mrb[0].mxu0
        %1752 = vmatprep.mubr.f32.mxu0 0.0
        %1753 = vmatmul.mubr.f32.gmra.mrb[0].mxu0 %v1603
        %v1754 = vpop.f32.mrb[0].mxu0
        %v1755 = vadd.f32 %v1651, %v1754
        %v1756 = vpop.f32.mrb[0].mxu0
        %1757 = vmatprep.mubr.f32.mxu0 0.0
        %1758 = vmatmul.mubr.f32.gmra.mrb[0].mxu0 %v1604
        %v1759 = vpop.f32.mrb[0].mxu0
        %v1760 = vadd.f32 %v1651, %v1759
        %v1761 = vpop.f32.mrb[0].mxu0
        %1762 = vmatprep.mubr.f32.mxu0 0.0
        %1763 = vmatmul.mubr.f32.gmra.mrb[0].mxu0 %v1605
        %v1764 = vpop.f32.mrb[0].mxu0
        %v1765 = vadd.f32 %v1651, %v1764
        %v1766 = vpop.f32.mrb[0].mxu0
        %1767 = vmatprep.mubr.f32.mxu0 0.0
        %1768 = vmatmul.mubr.f32.gmra.mrb[0].mxu0 %v1606
        %v1769 = vpop.f32.mrb[0].mxu0
        %v1770 = vadd.f32 %v1651, %v1769
        %v1771 = vpop.f32.mrb[0].mxu0
        %1772 = vmatprep.mubr.f32.mxu0 0.0
        %1773 = vmatmul.mubr.f32.gmra.mrb[0].mxu0 %v1607
        %v1774 = vpop.f32.mrb[0].mxu0
        %v1775 = vadd.f32 %v1651, %v1774
        %v1776 = vpop.f32.mrb[0].mxu0
        %1777 = vmatprep.mubr.f32.mxu0 0.0
        %1778 = vmatmul.mubr.f32.gmra.mrb[0].mxu0 %v1608
        %v1779 = vpop.f32.mrb[0].mxu0
        %v1780 = vadd.f32 %v1651, %v1779
        %v1781 = vpop.f32.mrb[0].mxu0
        %1782 = vmatprep.mubr.f32.mxu0 0.0
        %1783 = vmatmul.mubr.f32.gmra.mrb[0].mxu0 %v1609
        %v1784 = vpop.f32.mrb[0].mxu0
        %v1785 = vadd.f32 %v1651, %v1784
        %v1786 = vpop.f32.mrb[0].mxu0
        %1787 = vmatprep.mubr.f32.mxu0 0.0
        %1788 = vmatmul.mubr.f32.gmra.mrb[0].mxu0 %v1610
        %v1789 = vpop.f32.mrb[0].mxu0
        %v1790 = vadd.f32 %v1651, %v1789
        %v1791 = vpop.f32.mrb[0].mxu0
        %1792 = vmatprep.mubr.f32.mxu0 0.0
        %1793 = vmatmul.mubr.f32.gmra.mrb[0].mxu0 %v1611
        %v1794 = vpop.f32.mrb[0].mxu0
        %v1795 = vadd.f32 %v1651, %v1794
        %v1796 = vpop.f32.mrb[0].mxu0
        %1797 = vmatprep.mubr.f32.mxu0 0.0
        %1798 = vmatmul.mubr.f32.gmra.mrb[0].mxu0 %v1612
        %v1799 = vpop.f32.mrb[0].mxu0
        %v1800 = vadd.f32 %v1651, %v1799
        %v1801 = vpop.f32.mrb[0].mxu0
        %1802 = vmatprep.mubr.f32.mxu0 0.0
        %1803 = vmatmul.mubr.f32.gmra.mrb[0].mxu0 %v1613
        %v1804 = vpop.f32.mrb[0].mxu0
        %v1805 = vadd.f32 %v1651, %v1804
        %v1806 = vpop.f32.mrb[0].mxu0
        %1807 = vmatprep.mubr.f32.mxu0 0.0
        %1808 = vmatmul.mubr.f32.gmra.mrb[0].mxu0 %v1614
        %v1809 = vpop.f32.mrb[0].mxu0
        %v1810 = vadd.f32 %v1651, %v1809
        %v1811 = vpop.f32.mrb[0].mxu0
        %1812 = vmatprep.mubr.f32.mxu0 0.0
        %1813 = vmatmul.mubr.f32.gmra.mrb[0].mxu0 %v1615
        %v1814 = vpop.f32.mrb[0].mxu0
        %v1815 = vadd.f32 %v1651, %v1814
        %v1816 = vpop.f32.mrb[0].mxu0
        %1817 = vmatprep.mubr.f32.mxu0 0.0
        %1818 = vmatmul.mubr.f32.gmra.mrb[0].mxu0 %v1616
        %v1819 = vpop.f32.mrb[0].mxu0
        %v1820 = vadd.f32 %v1651, %v1819
        %v1821 = vpop.f32.mrb[0].mxu0
        %1822 = vmatprep.mubr.f32.mxu0 0.0
        %1823 = vmatmul.mubr.f32.gmra.mrb[0].mxu0 %v1617
        %v1824 = vpop.f32.mrb[0].mxu0
        %v1825 = vadd.f32 %v1651, %v1824
        %v1826 = vpop.f32.mrb[0].mxu0
        %1827 = vmatprep.mubr.f32.mxu0 0.0
        %1828 = vmatmul.mubr.f32.gmra.mrb[0].mxu0 %v1618
        %v1829 = vpop.f32.mrb[0].mxu0
        %v1830 = vadd.f32 %v1651, %v1829
        %v1831 = vpop.f32.mrb[0].mxu0
        %1832 = vmatprep.mubr.f32.mxu0 0.0
        %1833 = vmatmul.mubr.f32.gmra.mrb[0].mxu0 %v1619
        %v1834 = vpop.f32.mrb[0].mxu0
        %v1835 = vadd.f32 %v1651, %v1834
        %v1836 = vpop.f32.mrb[0].mxu0
        %1837 = vmatprep.mubr.f32.mxu0 0.0
        %1838 = vmatmul.mubr.f32.gmra.mrb[0].mxu0 %v1620
        %v1839 = vpop.f32.mrb[0].mxu0
        %v1840 = vadd.f32 %v1651, %v1839
        %v1841 = vpop.f32.mrb[0].mxu0
        %1842 = vmatprep.mubr.f32.mxu0 0.0
        %1843 = vmatmul.mubr.f32.gmra.mrb[0].mxu0 %v1621
        %v1844 = vpop.f32.mrb[0].mxu0
        %v1845 = vadd.f32 %v1651, %v1844
        %v1846 = vpop.f32.mrb[0].mxu0
        %1847 = vmatprep.mubr.f32.mxu0 0.0
        %1848 = vmatmul.mubr.f32.gmra.mrb[0].mxu0 %v1622
        %v1849 = vpop.f32.mrb[0].mxu0
        %v1850 = vadd.f32 %v1651, %v1849
        %v1851 = vpop.f32.mrb[0].mxu0
        %1852 = vmatprep.mubr.f32.mxu0 0.0
        %1853 = vmatmul.mubr.f32.gmra.mrb[0].mxu0 %v1623
        %v1854 = vpop.f32.mrb[0].mxu0
        %v1855 = vadd.f32 %v1651, %v1854
        %v1856 = vpop.f32.mrb[0].mxu0
        %1857 = vmatprep.mubr.f32.mxu0 0.0
        %1858 = vmatmul.mubr.f32.gmra.mrb[0].mxu0 %v1624
        %v1859 = vpop.f32.mrb[0].mxu0
        %v1860 = vadd.f32 %v1651, %v1859
        %v1861 = vpop.f32.mrb[0].mxu0
        %1862 = vmatprep.mubr.f32.mxu0 0.0
        %1863 = vmatmul.mubr.f32.gmra.mrb[0].mxu0 %v1625
        %v1864 = vpop.f32.mrb[0].mxu0
        %v1865 = vadd.f32 %v1651, %v1864
        %v1866 = vpop.f32.mrb[0].mxu0
        %1867 = vmatprep.mubr.f32.mxu0 0.0
        %1868 = vmatmul.mubr.f32.gmra.mrb[0].mxu0 %v1626
        %v1869 = vpop.f32.mrb[0].mxu0
        %v1870 = vadd.f32 %v1651, %v1869
        %v1871 = vpop.f32.mrb[0].mxu0
        %1872 = vmatprep.mubr.f32.mxu0 0.0
        %1873 = vmatmul.mubr.f32.gmra.mrb[0].mxu0 %v1627
        %v1874 = vpop.f32.mrb[0].mxu0
        %v1875 = vadd.f32 %v1651, %v1874
        %v1876 = vpop.f32.mrb[0].mxu0
        %1877 = vdwg.mxu0
        %v1878 = vmax.f32 %v1720, 0.0
        %v1879 = vmax.f32 %v1725, 0.0
        %v1880 = vmax.f32 %v1730, 0.0
        %v1881 = vmax.f32 %v1735, 0.0
        %v1882 = vmax.f32 %v1740, 0.0
        %v1883 = vmax.f32 %v1745, 0.0
        %v1884 = vmax.f32 %v1750, 0.0
        %v1885 = vmax.f32 %v1755, 0.0
        %v1886 = vmax.f32 %v1760, 0.0
        %v1887 = vmax.f32 %v1765, 0.0
        %v1888 = vmax.f32 %v1770, 0.0
        %v1889 = vmax.f32 %v1775, 0.0
        %v1890 = vmax.f32 %v1780, 0.0
        %v1891 = vmax.f32 %v1785, 0.0
        %v1892 = vmax.f32 %v1790, 0.0
        %v1893 = vmax.f32 %v1795, 0.0
        %v1894 = vmax.f32 %v1800, 0.0
        %v1895 = vmax.f32 %v1805, 0.0
        %v1896 = vmax.f32 %v1810, 0.0
        %v1897 = vmax.f32 %v1815, 0.0
        %v1898 = vmax.f32 %v1820, 0.0
        %v1899 = vmax.f32 %v1825, 0.0
        %v1900 = vmax.f32 %v1830, 0.0
        %v1901 = vmax.f32 %v1835, 0.0
        %v1902 = vmax.f32 %v1840, 0.0
        %v1903 = vmax.f32 %v1845, 0.0
        %v1904 = vmax.f32 %v1850, 0.0
        %v1905 = vmax.f32 %v1855, 0.0
        %v1906 = vmax.f32 %v1860, 0.0
        %v1907 = vmax.f32 %v1865, 0.0
        %v1908 = vmax.f32 %v1870, 0.0
        %v1909 = vmax.f32 %v1875, 0.0
        %s1910 = scalar_lea.vmem [#allocation5], 768
        %v1911 = vld [vmem:[%s1910] sm:$0xff]
        %v1912 = vld [vmem:[%s1910 + $0x8] sm:$0xff]
        %v1913 = vld [vmem:[%s1910 + $0x10] sm:$0xff]
        %v1914 = vld [vmem:[%s1910 + $0x18] sm:$0xff]
        %v1915 = vld [vmem:[%s1910 + $0x20] sm:$0xff]
        %v1916 = vld [vmem:[%s1910 + $0x28] sm:$0xff]
        %v1917 = vld [vmem:[%s1910 + $0x30] sm:$0xff]
        %v1918 = vld [vmem:[%s1910 + $0x38] sm:$0xff]
        %v1919 = vld [vmem:[%s1910 + $0x40] sm:$0xff]
        %v1920 = vld [vmem:[%s1910 + $0x48] sm:$0xff]
        %v1921 = vld [vmem:[%s1910 + $0x50] sm:$0xff]
        %v1922 = vld [vmem:[%s1910 + $0x58] sm:$0xff]
        %v1923 = vld [vmem:[%s1910 + $0x60] sm:$0xff]
        %v1924 = vld [vmem:[%s1910 + $0x68] sm:$0xff]
        %v1925 = vld [vmem:[%s1910 + $0x70] sm:$0xff]
        %v1926 = vld [vmem:[%s1910 + $0x78] sm:$0xff]
        %s1927 = scalar_lea.vmem [#allocation7], 6
        %v1928 = vld [vmem:[%s1927] sm:$0x1]
        %v1930 = vlaneseq
        %v1931 = vshrl.u32 %v1930, 7
        %v1932 = vsub.s32 0, %v1931
        %v1933 = vrot.slane %v1928, %v1932
        %1935 = vmatprep.subr.mxu0 0.0
        %1936 = vmatpush1.msra.mxu0 %v1911
        %1937 = vmatprep.subr.mxu0 0.0
        %1938 = vmatpush1.msra.mxu0 %v1912
        %1939 = vmatprep.subr.mxu0 0.0
        %1940 = vmatpush1.msra.mxu0 %v1913
        %1941 = vmatprep.subr.mxu0 0.0
        %1942 = vmatpush1.msra.mxu0 %v1914
        %1943 = vmatprep.subr.mxu0 0.0
        %1944 = vmatpush1.msra.mxu0 %v1915
        %1945 = vmatprep.subr.mxu0 0.0
        %1946 = vmatpush1.msra.mxu0 %v1916
        %1947 = vmatprep.subr.mxu0 0.0
        %1948 = vmatpush1.msra.mxu0 %v1917
        %1949 = vmatprep.subr.mxu0 0.0
        %1950 = vmatpush1.msra.mxu0 %v1918
        %1951 = vmatprep.subr.mxu0 0.0
        %1952 = vmatpush1.msra.mxu0 %v1919
        %1953 = vmatprep.subr.mxu0 0.0
        %1954 = vmatpush1.msra.mxu0 %v1920
        %1955 = vmatprep.subr.mxu0 0.0
        %1956 = vmatpush1.msra.mxu0 %v1921
        %1957 = vmatprep.subr.mxu0 0.0
        %1958 = vmatpush1.msra.mxu0 %v1922
        %1959 = vmatprep.subr.mxu0 0.0
        %1960 = vmatpush1.msra.mxu0 %v1923
        %1961 = vmatprep.subr.mxu0 0.0
        %1962 = vmatpush1.msra.mxu0 %v1924
        %1963 = vmatprep.subr.mxu0 0.0
        %1964 = vmatpush1.msra.mxu0 %v1925
        %1965 = vmatprep.subr.mxu0 0.0
        %1966 = vmatpush1.msra.mxu0 %v1926
        %1967 = vmatprep.subr.mxu0 0.0
        %1968 = vmatpush1.msra.mxu0 0.0
        %1969 = vmatprep.subr.mxu0 0.0
        %1970 = vmatpush1.msra.mxu0 0.0
        %1971 = vmatprep.subr.mxu0 0.0
        %1972 = vmatpush1.msra.mxu0 0.0
        %1973 = vmatprep.subr.mxu0 0.0
        %1974 = vmatpush1.msra.mxu0 0.0
        %1975 = vmatprep.subr.mxu0 0.0
        %1976 = vmatpush1.msra.mxu0 0.0
        %1977 = vmatprep.subr.mxu0 0.0
        %1978 = vmatpush1.msra.mxu0 0.0
        %1979 = vmatprep.subr.mxu0 0.0
        %1980 = vmatpush1.msra.mxu0 0.0
        %1981 = vmatprep.subr.mxu0 0.0
        %1982 = vmatpush1.msra.mxu0 0.0
        %1983 = vmatprep.subr.mxu0 0.0
        %1984 = vmatpush1.msra.mxu0 0.0
        %1985 = vmatprep.subr.mxu0 0.0
        %1986 = vmatpush1.msra.mxu0 0.0
        %1987 = vmatprep.subr.mxu0 0.0
        %1988 = vmatpush1.msra.mxu0 0.0
        %1989 = vmatprep.subr.mxu0 0.0
        %1990 = vmatpush1.msra.mxu0 0.0
        %1991 = vmatprep.subr.mxu0 0.0
        %1992 = vmatpush1.msra.mxu0 0.0
        %1993 = vmatprep.subr.mxu0 0.0
        %1994 = vmatpush1.msra.mxu0 0.0
        %1995 = vmatprep.subr.mxu0 0.0
        %1996 = vmatpush1.msra.mxu0 0.0
        %1997 = vmatprep.subr.mxu0 0.0
        %1998 = vmatpush1.msra.mxu0 0.0
        %1999 = vmatprep.mubr.f32.mxu0 0.0
        %2000 = vmatmul.mubr.f32.gmra.mrb[0].mxu0 %v1878
        %v2001 = vpop.f32.mrb[0].mxu0
        %v2002 = vadd.f32 %v1933, %v2001
        %v2003 = vpop.f32.mrb[0].mxu0
        %2004 = vmatprep.mubr.f32.mxu0 0.0
        %2005 = vmatmul.mubr.f32.gmra.mrb[0].mxu0 %v1879
        %v2006 = vpop.f32.mrb[0].mxu0
        %v2007 = vadd.f32 %v1933, %v2006
        %v2008 = vpop.f32.mrb[0].mxu0
        %2009 = vmatprep.mubr.f32.mxu0 0.0
        %2010 = vmatmul.mubr.f32.gmra.mrb[0].mxu0 %v1880
        %v2011 = vpop.f32.mrb[0].mxu0
        %v2012 = vadd.f32 %v1933, %v2011
        %v2013 = vpop.f32.mrb[0].mxu0
        %2014 = vmatprep.mubr.f32.mxu0 0.0
        %2015 = vmatmul.mubr.f32.gmra.mrb[0].mxu0 %v1881
        %v2016 = vpop.f32.mrb[0].mxu0
        %v2017 = vadd.f32 %v1933, %v2016
        %v2018 = vpop.f32.mrb[0].mxu0
        %2019 = vmatprep.mubr.f32.mxu0 0.0
        %2020 = vmatmul.mubr.f32.gmra.mrb[0].mxu0 %v1882
        %v2021 = vpop.f32.mrb[0].mxu0
        %v2022 = vadd.f32 %v1933, %v2021
        %v2023 = vpop.f32.mrb[0].mxu0
        %2024 = vmatprep.mubr.f32.mxu0 0.0
        %2025 = vmatmul.mubr.f32.gmra.mrb[0].mxu0 %v1883
        %v2026 = vpop.f32.mrb[0].mxu0
        %v2027 = vadd.f32 %v1933, %v2026
        %v2028 = vpop.f32.mrb[0].mxu0
        %2029 = vmatprep.mubr.f32.mxu0 0.0
        %2030 = vmatmul.mubr.f32.gmra.mrb[0].mxu0 %v1884
        %v2031 = vpop.f32.mrb[0].mxu0
        %v2032 = vadd.f32 %v1933, %v2031
        %v2033 = vpop.f32.mrb[0].mxu0
        %2034 = vmatprep.mubr.f32.mxu0 0.0
        %2035 = vmatmul.mubr.f32.gmra.mrb[0].mxu0 %v1885
        %v2036 = vpop.f32.mrb[0].mxu0
        %v2037 = vadd.f32 %v1933, %v2036
        %v2038 = vpop.f32.mrb[0].mxu0
        %2039 = vmatprep.mubr.f32.mxu0 0.0
        %2040 = vmatmul.mubr.f32.gmra.mrb[0].mxu0 %v1886
        %v2041 = vpop.f32.mrb[0].mxu0
        %v2042 = vadd.f32 %v1933, %v2041
        %v2043 = vpop.f32.mrb[0].mxu0
        %2044 = vmatprep.mubr.f32.mxu0 0.0
        %2045 = vmatmul.mubr.f32.gmra.mrb[0].mxu0 %v1887
        %v2046 = vpop.f32.mrb[0].mxu0
        %v2047 = vadd.f32 %v1933, %v2046
        %v2048 = vpop.f32.mrb[0].mxu0
        %2049 = vmatprep.mubr.f32.mxu0 0.0
        %2050 = vmatmul.mubr.f32.gmra.mrb[0].mxu0 %v1888
        %v2051 = vpop.f32.mrb[0].mxu0
        %v2052 = vadd.f32 %v1933, %v2051
        %v2053 = vpop.f32.mrb[0].mxu0
        %2054 = vmatprep.mubr.f32.mxu0 0.0
        %2055 = vmatmul.mubr.f32.gmra.mrb[0].mxu0 %v1889
        %v2056 = vpop.f32.mrb[0].mxu0
        %v2057 = vadd.f32 %v1933, %v2056
        %v2058 = vpop.f32.mrb[0].mxu0
        %2059 = vmatprep.mubr.f32.mxu0 0.0
        %2060 = vmatmul.mubr.f32.gmra.mrb[0].mxu0 %v1890
        %v2061 = vpop.f32.mrb[0].mxu0
        %v2062 = vadd.f32 %v1933, %v2061
        %v2063 = vpop.f32.mrb[0].mxu0
        %2064 = vmatprep.mubr.f32.mxu0 0.0
        %2065 = vmatmul.mubr.f32.gmra.mrb[0].mxu0 %v1891
        %v2066 = vpop.f32.mrb[0].mxu0
        %v2067 = vadd.f32 %v1933, %v2066
        %v2068 = vpop.f32.mrb[0].mxu0
        %2069 = vmatprep.mubr.f32.mxu0 0.0
        %2070 = vmatmul.mubr.f32.gmra.mrb[0].mxu0 %v1892
        %v2071 = vpop.f32.mrb[0].mxu0
        %v2072 = vadd.f32 %v1933, %v2071
        %v2073 = vpop.f32.mrb[0].mxu0
        %2074 = vmatprep.mubr.f32.mxu0 0.0
        %2075 = vmatmul.mubr.f32.gmra.mrb[0].mxu0 %v1893
        %v2076 = vpop.f32.mrb[0].mxu0
        %v2077 = vadd.f32 %v1933, %v2076
        %v2078 = vpop.f32.mrb[0].mxu0
        %2079 = vmatprep.mubr.f32.mxu0 0.0
        %2080 = vmatmul.mubr.f32.gmra.mrb[0].mxu0 %v1894
        %v2081 = vpop.f32.mrb[0].mxu0
        %v2082 = vadd.f32 %v1933, %v2081
        %v2083 = vpop.f32.mrb[0].mxu0
        %2084 = vmatprep.mubr.f32.mxu0 0.0
        %2085 = vmatmul.mubr.f32.gmra.mrb[0].mxu0 %v1895
        %v2086 = vpop.f32.mrb[0].mxu0
        %v2087 = vadd.f32 %v1933, %v2086
        %v2088 = vpop.f32.mrb[0].mxu0
        %2089 = vmatprep.mubr.f32.mxu0 0.0
        %2090 = vmatmul.mubr.f32.gmra.mrb[0].mxu0 %v1896
        %v2091 = vpop.f32.mrb[0].mxu0
        %v2092 = vadd.f32 %v1933, %v2091
        %v2093 = vpop.f32.mrb[0].mxu0
        %2094 = vmatprep.mubr.f32.mxu0 0.0
        %2095 = vmatmul.mubr.f32.gmra.mrb[0].mxu0 %v1897
        %v2096 = vpop.f32.mrb[0].mxu0
        %v2097 = vadd.f32 %v1933, %v2096
        %v2098 = vpop.f32.mrb[0].mxu0
        %2099 = vmatprep.mubr.f32.mxu0 0.0
        %2100 = vmatmul.mubr.f32.gmra.mrb[0].mxu0 %v1898
        %v2101 = vpop.f32.mrb[0].mxu0
        %v2102 = vadd.f32 %v1933, %v2101
        %v2103 = vpop.f32.mrb[0].mxu0
        %2104 = vmatprep.mubr.f32.mxu0 0.0
        %2105 = vmatmul.mubr.f32.gmra.mrb[0].mxu0 %v1899
        %v2106 = vpop.f32.mrb[0].mxu0
        %v2107 = vadd.f32 %v1933, %v2106
        %v2108 = vpop.f32.mrb[0].mxu0
        %2109 = vmatprep.mubr.f32.mxu0 0.0
        %2110 = vmatmul.mubr.f32.gmra.mrb[0].mxu0 %v1900
        %v2111 = vpop.f32.mrb[0].mxu0
        %v2112 = vadd.f32 %v1933, %v2111
        %v2113 = vpop.f32.mrb[0].mxu0
        %2114 = vmatprep.mubr.f32.mxu0 0.0
        %2115 = vmatmul.mubr.f32.gmra.mrb[0].mxu0 %v1901
        %v2116 = vpop.f32.mrb[0].mxu0
        %v2117 = vadd.f32 %v1933, %v2116
        %v2118 = vpop.f32.mrb[0].mxu0
        %2119 = vmatprep.mubr.f32.mxu0 0.0
        %2120 = vmatmul.mubr.f32.gmra.mrb[0].mxu0 %v1902
        %v2121 = vpop.f32.mrb[0].mxu0
        %v2122 = vadd.f32 %v1933, %v2121
        %v2123 = vpop.f32.mrb[0].mxu0
        %2124 = vmatprep.mubr.f32.mxu0 0.0
        %2125 = vmatmul.mubr.f32.gmra.mrb[0].mxu0 %v1903
        %v2126 = vpop.f32.mrb[0].mxu0
        %v2127 = vadd.f32 %v1933, %v2126
        %v2128 = vpop.f32.mrb[0].mxu0
        %2129 = vmatprep.mubr.f32.mxu0 0.0
        %2130 = vmatmul.mubr.f32.gmra.mrb[0].mxu0 %v1904
        %v2131 = vpop.f32.mrb[0].mxu0
        %v2132 = vadd.f32 %v1933, %v2131
        %v2133 = vpop.f32.mrb[0].mxu0
        %2134 = vmatprep.mubr.f32.mxu0 0.0
        %2135 = vmatmul.mubr.f32.gmra.mrb[0].mxu0 %v1905
        %v2136 = vpop.f32.mrb[0].mxu0
        %v2137 = vadd.f32 %v1933, %v2136
        %v2138 = vpop.f32.mrb[0].mxu0
        %2139 = vmatprep.mubr.f32.mxu0 0.0
        %2140 = vmatmul.mubr.f32.gmra.mrb[0].mxu0 %v1906
        %v2141 = vpop.f32.mrb[0].mxu0
        %v2142 = vadd.f32 %v1933, %v2141
        %v2143 = vpop.f32.mrb[0].mxu0
        %2144 = vmatprep.mubr.f32.mxu0 0.0
        %2145 = vmatmul.mubr.f32.gmra.mrb[0].mxu0 %v1907
        %v2146 = vpop.f32.mrb[0].mxu0
        %v2147 = vadd.f32 %v1933, %v2146
        %v2148 = vpop.f32.mrb[0].mxu0
        %2149 = vmatprep.mubr.f32.mxu0 0.0
        %2150 = vmatmul.mubr.f32.gmra.mrb[0].mxu0 %v1908
        %v2151 = vpop.f32.mrb[0].mxu0
        %v2152 = vadd.f32 %v1933, %v2151
        %v2153 = vpop.f32.mrb[0].mxu0
        %2154 = vmatprep.mubr.f32.mxu0 0.0
        %2155 = vmatmul.mubr.f32.gmra.mrb[0].mxu0 %v1909
        %v2156 = vpop.f32.mrb[0].mxu0
        %v2157 = vadd.f32 %v1933, %v2156
        %v2158 = vpop.f32.mrb[0].mxu0
        %2159 = vdwg.mxu0
        %v2160 = vmax.f32 %v2002, 0.0
        %v2161 = vmax.f32 %v2007, 0.0
        %v2162 = vmax.f32 %v2012, 0.0
        %v2163 = vmax.f32 %v2017, 0.0
        %v2164 = vmax.f32 %v2022, 0.0
        %v2165 = vmax.f32 %v2027, 0.0
        %v2166 = vmax.f32 %v2032, 0.0
        %v2167 = vmax.f32 %v2037, 0.0
        %v2168 = vmax.f32 %v2042, 0.0
        %v2169 = vmax.f32 %v2047, 0.0
        %v2170 = vmax.f32 %v2052, 0.0
        %v2171 = vmax.f32 %v2057, 0.0
        %v2172 = vmax.f32 %v2062, 0.0
        %v2173 = vmax.f32 %v2067, 0.0
        %v2174 = vmax.f32 %v2072, 0.0
        %v2175 = vmax.f32 %v2077, 0.0
        %v2176 = vmax.f32 %v2082, 0.0
        %v2177 = vmax.f32 %v2087, 0.0
        %v2178 = vmax.f32 %v2092, 0.0
        %v2179 = vmax.f32 %v2097, 0.0
        %v2180 = vmax.f32 %v2102, 0.0
        %v2181 = vmax.f32 %v2107, 0.0
        %v2182 = vmax.f32 %v2112, 0.0
        %v2183 = vmax.f32 %v2117, 0.0
        %v2184 = vmax.f32 %v2122, 0.0
        %v2185 = vmax.f32 %v2127, 0.0
        %v2186 = vmax.f32 %v2132, 0.0
        %v2187 = vmax.f32 %v2137, 0.0
        %v2188 = vmax.f32 %v2142, 0.0
        %v2189 = vmax.f32 %v2147, 0.0
        %v2190 = vmax.f32 %v2152, 0.0
        %v2191 = vmax.f32 %v2157, 0.0
        %s2192 = scalar_lea.vmem [#allocation5], 896
        %v2193 = vld [vmem:[%s2192] sm:$0xff]
        %v2194 = vld [vmem:[%s2192 + $0x8] sm:$0xff]
        %v2195 = vld [vmem:[%s2192 + $0x10] sm:$0xff]
        %v2196 = vld [vmem:[%s2192 + $0x18] sm:$0xff]
        %v2197 = vld [vmem:[%s2192 + $0x20] sm:$0xff]
        %v2198 = vld [vmem:[%s2192 + $0x28] sm:$0xff]
        %v2199 = vld [vmem:[%s2192 + $0x30] sm:$0xff]
        %v2200 = vld [vmem:[%s2192 + $0x38] sm:$0xff]
        %v2201 = vld [vmem:[%s2192 + $0x40] sm:$0xff]
        %v2202 = vld [vmem:[%s2192 + $0x48] sm:$0xff]
        %v2203 = vld [vmem:[%s2192 + $0x50] sm:$0xff]
        %v2204 = vld [vmem:[%s2192 + $0x58] sm:$0xff]
        %v2205 = vld [vmem:[%s2192 + $0x60] sm:$0xff]
        %v2206 = vld [vmem:[%s2192 + $0x68] sm:$0xff]
        %v2207 = vld [vmem:[%s2192 + $0x70] sm:$0xff]
        %v2208 = vld [vmem:[%s2192 + $0x78] sm:$0xff]
        %s2209 = scalar_lea.vmem [#allocation7], 7
        %v2210 = vld [vmem:[%s2209] sm:$0x1]
        %v2212 = vlaneseq
        %v2213 = vshrl.u32 %v2212, 7
        %v2214 = vsub.s32 0, %v2213
        %v2215 = vrot.slane %v2210, %v2214
        %2217 = vmatprep.subr.mxu0 0.0
        %2218 = vmatpush1.msra.mxu0 %v2193
        %2219 = vmatprep.subr.mxu0 0.0
        %2220 = vmatpush1.msra.mxu0 %v2194
        %2221 = vmatprep.subr.mxu0 0.0
        %2222 = vmatpush1.msra.mxu0 %v2195
        %2223 = vmatprep.subr.mxu0 0.0
        %2224 = vmatpush1.msra.mxu0 %v2196
        %2225 = vmatprep.subr.mxu0 0.0
        %2226 = vmatpush1.msra.mxu0 %v2197
        %2227 = vmatprep.subr.mxu0 0.0
        %2228 = vmatpush1.msra.mxu0 %v2198
        %2229 = vmatprep.subr.mxu0 0.0
        %2230 = vmatpush1.msra.mxu0 %v2199
        %2231 = vmatprep.subr.mxu0 0.0
        %2232 = vmatpush1.msra.mxu0 %v2200
        %2233 = vmatprep.subr.mxu0 0.0
        %2234 = vmatpush1.msra.mxu0 %v2201
        %2235 = vmatprep.subr.mxu0 0.0
        %2236 = vmatpush1.msra.mxu0 %v2202
        %2237 = vmatprep.subr.mxu0 0.0
        %2238 = vmatpush1.msra.mxu0 %v2203
        %2239 = vmatprep.subr.mxu0 0.0
        %2240 = vmatpush1.msra.mxu0 %v2204
        %2241 = vmatprep.subr.mxu0 0.0
        %2242 = vmatpush1.msra.mxu0 %v2205
        %2243 = vmatprep.subr.mxu0 0.0
        %2244 = vmatpush1.msra.mxu0 %v2206
        %2245 = vmatprep.subr.mxu0 0.0
        %2246 = vmatpush1.msra.mxu0 %v2207
        %2247 = vmatprep.subr.mxu0 0.0
        %2248 = vmatpush1.msra.mxu0 %v2208
        %2249 = vmatprep.subr.mxu0 0.0
        %2250 = vmatpush1.msra.mxu0 0.0
        %2251 = vmatprep.subr.mxu0 0.0
        %2252 = vmatpush1.msra.mxu0 0.0
        %2253 = vmatprep.subr.mxu0 0.0
        %2254 = vmatpush1.msra.mxu0 0.0
        %2255 = vmatprep.subr.mxu0 0.0
        %2256 = vmatpush1.msra.mxu0 0.0
        %2257 = vmatprep.subr.mxu0 0.0
        %2258 = vmatpush1.msra.mxu0 0.0
        %2259 = vmatprep.subr.mxu0 0.0
        %2260 = vmatpush1.msra.mxu0 0.0
        %2261 = vmatprep.subr.mxu0 0.0
        %2262 = vmatpush1.msra.mxu0 0.0
        %2263 = vmatprep.subr.mxu0 0.0
        %2264 = vmatpush1.msra.mxu0 0.0
        %2265 = vmatprep.subr.mxu0 0.0
        %2266 = vmatpush1.msra.mxu0 0.0
        %2267 = vmatprep.subr.mxu0 0.0
        %2268 = vmatpush1.msra.mxu0 0.0
        %2269 = vmatprep.subr.mxu0 0.0
        %2270 = vmatpush1.msra.mxu0 0.0
        %2271 = vmatprep.subr.mxu0 0.0
        %2272 = vmatpush1.msra.mxu0 0.0
        %2273 = vmatprep.subr.mxu0 0.0
        %2274 = vmatpush1.msra.mxu0 0.0
        %2275 = vmatprep.subr.mxu0 0.0
        %2276 = vmatpush1.msra.mxu0 0.0
        %2277 = vmatprep.subr.mxu0 0.0
        %2278 = vmatpush1.msra.mxu0 0.0
        %2279 = vmatprep.subr.mxu0 0.0
        %2280 = vmatpush1.msra.mxu0 0.0
        %2281 = vmatprep.mubr.f32.mxu0 0.0
        %2282 = vmatmul.mubr.f32.gmra.mrb[0].mxu0 %v2160
        %v2283 = vpop.f32.mrb[0].mxu0
        %v2284 = vadd.f32 %v2215, %v2283
        %v2285 = vpop.f32.mrb[0].mxu0
        %2286 = vmatprep.mubr.f32.mxu0 0.0
        %2287 = vmatmul.mubr.f32.gmra.mrb[0].mxu0 %v2161
        %v2288 = vpop.f32.mrb[0].mxu0
        %v2289 = vadd.f32 %v2215, %v2288
        %v2290 = vpop.f32.mrb[0].mxu0
        %2291 = vmatprep.mubr.f32.mxu0 0.0
        %2292 = vmatmul.mubr.f32.gmra.mrb[0].mxu0 %v2162
        %v2293 = vpop.f32.mrb[0].mxu0
        %v2294 = vadd.f32 %v2215, %v2293
        %v2295 = vpop.f32.mrb[0].mxu0
        %2296 = vmatprep.mubr.f32.mxu0 0.0
        %2297 = vmatmul.mubr.f32.gmra.mrb[0].mxu0 %v2163
        %v2298 = vpop.f32.mrb[0].mxu0
        %v2299 = vadd.f32 %v2215, %v2298
        %v2300 = vpop.f32.mrb[0].mxu0
        %2301 = vmatprep.mubr.f32.mxu0 0.0
        %2302 = vmatmul.mubr.f32.gmra.mrb[0].mxu0 %v2164
        %v2303 = vpop.f32.mrb[0].mxu0
        %v2304 = vadd.f32 %v2215, %v2303
        %v2305 = vpop.f32.mrb[0].mxu0
        %2306 = vmatprep.mubr.f32.mxu0 0.0
        %2307 = vmatmul.mubr.f32.gmra.mrb[0].mxu0 %v2165
        %v2308 = vpop.f32.mrb[0].mxu0
        %v2309 = vadd.f32 %v2215, %v2308
        %v2310 = vpop.f32.mrb[0].mxu0
        %2311 = vmatprep.mubr.f32.mxu0 0.0
        %2312 = vmatmul.mubr.f32.gmra.mrb[0].mxu0 %v2166
        %v2313 = vpop.f32.mrb[0].mxu0
        %v2314 = vadd.f32 %v2215, %v2313
        %v2315 = vpop.f32.mrb[0].mxu0
        %2316 = vmatprep.mubr.f32.mxu0 0.0
        %2317 = vmatmul.mubr.f32.gmra.mrb[0].mxu0 %v2167
        %v2318 = vpop.f32.mrb[0].mxu0
        %v2319 = vadd.f32 %v2215, %v2318
        %v2320 = vpop.f32.mrb[0].mxu0
        %2321 = vmatprep.mubr.f32.mxu0 0.0
        %2322 = vmatmul.mubr.f32.gmra.mrb[0].mxu0 %v2168
        %v2323 = vpop.f32.mrb[0].mxu0
        %v2324 = vadd.f32 %v2215, %v2323
        %v2325 = vpop.f32.mrb[0].mxu0
        %2326 = vmatprep.mubr.f32.mxu0 0.0
        %2327 = vmatmul.mubr.f32.gmra.mrb[0].mxu0 %v2169
        %v2328 = vpop.f32.mrb[0].mxu0
        %v2329 = vadd.f32 %v2215, %v2328
        %v2330 = vpop.f32.mrb[0].mxu0
        %2331 = vmatprep.mubr.f32.mxu0 0.0
        %2332 = vmatmul.mubr.f32.gmra.mrb[0].mxu0 %v2170
        %v2333 = vpop.f32.mrb[0].mxu0
        %v2334 = vadd.f32 %v2215, %v2333
        %v2335 = vpop.f32.mrb[0].mxu0
        %2336 = vmatprep.mubr.f32.mxu0 0.0
        %2337 = vmatmul.mubr.f32.gmra.mrb[0].mxu0 %v2171
        %v2338 = vpop.f32.mrb[0].mxu0
        %v2339 = vadd.f32 %v2215, %v2338
        %v2340 = vpop.f32.mrb[0].mxu0
        %2341 = vmatprep.mubr.f32.mxu0 0.0
        %2342 = vmatmul.mubr.f32.gmra.mrb[0].mxu0 %v2172
        %v2343 = vpop.f32.mrb[0].mxu0
        %v2344 = vadd.f32 %v2215, %v2343
        %v2345 = vpop.f32.mrb[0].mxu0
        %2346 = vmatprep.mubr.f32.mxu0 0.0
        %2347 = vmatmul.mubr.f32.gmra.mrb[0].mxu0 %v2173
        %v2348 = vpop.f32.mrb[0].mxu0
        %v2349 = vadd.f32 %v2215, %v2348
        %v2350 = vpop.f32.mrb[0].mxu0
        %2351 = vmatprep.mubr.f32.mxu0 0.0
        %2352 = vmatmul.mubr.f32.gmra.mrb[0].mxu0 %v2174
        %v2353 = vpop.f32.mrb[0].mxu0
        %v2354 = vadd.f32 %v2215, %v2353
        %v2355 = vpop.f32.mrb[0].mxu0
        %2356 = vmatprep.mubr.f32.mxu0 0.0
        %2357 = vmatmul.mubr.f32.gmra.mrb[0].mxu0 %v2175
        %v2358 = vpop.f32.mrb[0].mxu0
        %v2359 = vadd.f32 %v2215, %v2358
        %v2360 = vpop.f32.mrb[0].mxu0
        %2361 = vmatprep.mubr.f32.mxu0 0.0
        %2362 = vmatmul.mubr.f32.gmra.mrb[0].mxu0 %v2176
        %v2363 = vpop.f32.mrb[0].mxu0
        %v2364 = vadd.f32 %v2215, %v2363
        %v2365 = vpop.f32.mrb[0].mxu0
        %2366 = vmatprep.mubr.f32.mxu0 0.0
        %2367 = vmatmul.mubr.f32.gmra.mrb[0].mxu0 %v2177
        %v2368 = vpop.f32.mrb[0].mxu0
        %v2369 = vadd.f32 %v2215, %v2368
        %v2370 = vpop.f32.mrb[0].mxu0
        %2371 = vmatprep.mubr.f32.mxu0 0.0
        %2372 = vmatmul.mubr.f32.gmra.mrb[0].mxu0 %v2178
        %v2373 = vpop.f32.mrb[0].mxu0
        %v2374 = vadd.f32 %v2215, %v2373
        %v2375 = vpop.f32.mrb[0].mxu0
        %2376 = vmatprep.mubr.f32.mxu0 0.0
        %2377 = vmatmul.mubr.f32.gmra.mrb[0].mxu0 %v2179
        %v2378 = vpop.f32.mrb[0].mxu0
        %v2379 = vadd.f32 %v2215, %v2378
        %v2380 = vpop.f32.mrb[0].mxu0
        %2381 = vmatprep.mubr.f32.mxu0 0.0
        %2382 = vmatmul.mubr.f32.gmra.mrb[0].mxu0 %v2180
        %v2383 = vpop.f32.mrb[0].mxu0
        %v2384 = vadd.f32 %v2215, %v2383
        %v2385 = vpop.f32.mrb[0].mxu0
        %2386 = vmatprep.mubr.f32.mxu0 0.0
        %2387 = vmatmul.mubr.f32.gmra.mrb[0].mxu0 %v2181
        %v2388 = vpop.f32.mrb[0].mxu0
        %v2389 = vadd.f32 %v2215, %v2388
        %v2390 = vpop.f32.mrb[0].mxu0
        %2391 = vmatprep.mubr.f32.mxu0 0.0
        %2392 = vmatmul.mubr.f32.gmra.mrb[0].mxu0 %v2182
        %v2393 = vpop.f32.mrb[0].mxu0
        %v2394 = vadd.f32 %v2215, %v2393
        %v2395 = vpop.f32.mrb[0].mxu0
        %2396 = vmatprep.mubr.f32.mxu0 0.0
        %2397 = vmatmul.mubr.f32.gmra.mrb[0].mxu0 %v2183
        %v2398 = vpop.f32.mrb[0].mxu0
        %v2399 = vadd.f32 %v2215, %v2398
        %v2400 = vpop.f32.mrb[0].mxu0
        %2401 = vmatprep.mubr.f32.mxu0 0.0
        %2402 = vmatmul.mubr.f32.gmra.mrb[0].mxu0 %v2184
        %v2403 = vpop.f32.mrb[0].mxu0
        %v2404 = vadd.f32 %v2215, %v2403
        %v2405 = vpop.f32.mrb[0].mxu0
        %2406 = vmatprep.mubr.f32.mxu0 0.0
        %2407 = vmatmul.mubr.f32.gmra.mrb[0].mxu0 %v2185
        %v2408 = vpop.f32.mrb[0].mxu0
        %v2409 = vadd.f32 %v2215, %v2408
        %v2410 = vpop.f32.mrb[0].mxu0
        %2411 = vmatprep.mubr.f32.mxu0 0.0
        %2412 = vmatmul.mubr.f32.gmra.mrb[0].mxu0 %v2186
        %v2413 = vpop.f32.mrb[0].mxu0
        %v2414 = vadd.f32 %v2215, %v2413
        %v2415 = vpop.f32.mrb[0].mxu0
        %2416 = vmatprep.mubr.f32.mxu0 0.0
        %2417 = vmatmul.mubr.f32.gmra.mrb[0].mxu0 %v2187
        %v2418 = vpop.f32.mrb[0].mxu0
        %v2419 = vadd.f32 %v2215, %v2418
        %v2420 = vpop.f32.mrb[0].mxu0
        %2421 = vmatprep.mubr.f32.mxu0 0.0
        %2422 = vmatmul.mubr.f32.gmra.mrb[0].mxu0 %v2188
        %v2423 = vpop.f32.mrb[0].mxu0
        %v2424 = vadd.f32 %v2215, %v2423
        %v2425 = vpop.f32.mrb[0].mxu0
        %2426 = vmatprep.mubr.f32.mxu0 0.0
        %2427 = vmatmul.mubr.f32.gmra.mrb[0].mxu0 %v2189
        %v2428 = vpop.f32.mrb[0].mxu0
        %v2429 = vadd.f32 %v2215, %v2428
        %v2430 = vpop.f32.mrb[0].mxu0
        %2431 = vmatprep.mubr.f32.mxu0 0.0
        %2432 = vmatmul.mubr.f32.gmra.mrb[0].mxu0 %v2190
        %v2433 = vpop.f32.mrb[0].mxu0
        %v2434 = vadd.f32 %v2215, %v2433
        %v2435 = vpop.f32.mrb[0].mxu0
        %2436 = vmatprep.mubr.f32.mxu0 0.0
        %2437 = vmatmul.mubr.f32.gmra.mrb[0].mxu0 %v2191
        %v2438 = vpop.f32.mrb[0].mxu0
        %v2439 = vadd.f32 %v2215, %v2438
        %v2440 = vpop.f32.mrb[0].mxu0
        %2441 = vdwg.mxu0
        %2442 = vst [vmem:[%s217] sm:$0xff] %v2284
        %2443 = vst [vmem:[%s217 + $0x8] sm:$0xff] %v2289
        %2444 = vst [vmem:[%s217 + $0x10] sm:$0xff] %v2294
        %2445 = vst [vmem:[%s217 + $0x18] sm:$0xff] %v2299
        %2446 = vst [vmem:[%s217 + $0x20] sm:$0xff] %v2304
        %2447 = vst [vmem:[%s217 + $0x28] sm:$0xff] %v2309
        %2448 = vst [vmem:[%s217 + $0x30] sm:$0xff] %v2314
        %2449 = vst [vmem:[%s217 + $0x38] sm:$0xff] %v2319
        %2450 = vst [vmem:[%s217 + $0x40] sm:$0xff] %v2324
        %2451 = vst [vmem:[%s217 + $0x48] sm:$0xff] %v2329
        %2452 = vst [vmem:[%s217 + $0x50] sm:$0xff] %v2334
        %2453 = vst [vmem:[%s217 + $0x58] sm:$0xff] %v2339
        %2454 = vst [vmem:[%s217 + $0x60] sm:$0xff] %v2344
        %2455 = vst [vmem:[%s217 + $0x68] sm:$0xff] %v2349
        %2456 = vst [vmem:[%s217 + $0x70] sm:$0xff] %v2354
        %2457 = vst [vmem:[%s217 + $0x78] sm:$0xff] %v2359
        %2458 = vst [vmem:[%s217 + $0x80] sm:$0xff] %v2364
        %2459 = vst [vmem:[%s217 + $0x88] sm:$0xff] %v2369
        %2460 = vst [vmem:[%s217 + $0x90] sm:$0xff] %v2374
        %2461 = vst [vmem:[%s217 + $0x98] sm:$0xff] %v2379
        %2462 = vst [vmem:[%s217 + $0xa0] sm:$0xff] %v2384
        %2463 = vst [vmem:[%s217 + $0xa8] sm:$0xff] %v2389
        %2464 = vst [vmem:[%s217 + $0xb0] sm:$0xff] %v2394
        %2465 = vst [vmem:[%s217 + $0xb8] sm:$0xff] %v2399
        %2466 = vst [vmem:[%s217 + $0xc0] sm:$0xff] %v2404
        %2467 = vst [vmem:[%s217 + $0xc8] sm:$0xff] %v2409
        %2468 = vst [vmem:[%s217 + $0xd0] sm:$0xff] %v2414
        %2469 = vst [vmem:[%s217 + $0xd8] sm:$0xff] %v2419
        %2470 = vst [vmem:[%s217 + $0xe0] sm:$0xff] %v2424
        %2471 = vst [vmem:[%s217 + $0xe8] sm:$0xff] %v2429
        %2472 = vst [vmem:[%s217 + $0xf0] sm:$0xff] %v2434
        %2473 = vst [vmem:[%s217 + $0xf8] sm:$0xff] %v2439
        %s2474 = sand.u32 %s97, 1
        %s2475 = scalar_lea.sflag [#allocation4], %s2474
        %s2476 = sand.u32 %s97, 1
        %s2477 = smul.addr %s2476, 256
        %s2478 = scalar_lea.vmem [#allocation8], %s2477
        // Predicated region
        $region45: #{tpu_custom_call.1} parent=31 // pred_check
          %p2479 = pneg %p107
        $region46: #{tpu_custom_call.1} parent=31 // pred_check_branch
          %2481 = sbr.rel (%p2479) target = $region48
        $region47: #{tpu_custom_call.1} parent=31 // pred_region
          %s2482 = smul.u32 32, %s21
          %s2484 = ssub.s32 4096, 4096
          %2485 = vsyncadd %s2475, %s2484
          %s2486 = smul.addr %s2482, 128
          %s2487 = scalar_lea.hbm %s3, %s2486
          %s2488 = sshll.u32 %s2478, 4
          %s2489 = int_to_ptr.vmem [resolvable:$true] %s2488
          %2494 = dma.vmem_to_hbm [thread:$0]  %s2489, 4096, %s2487, %s2475, 128, 128, 8
        $region48: #{tpu_custom_call.1} parent=31 // pred_fallthru
          _
      $region32: #{tpu_custom_call.1} parent=5 // pred_fallthru
        _
      %p2495 = scmp.le.s32.totalorder 2, %s16
      // Predicated region
      $region49: #{tpu_custom_call.1} parent=5 // pred_check
        %p2496 = pneg %p2495
      $region50: #{tpu_custom_call.1} parent=5 // pred_check_branch
        %2498 = sbr.rel (%p2496) target = $region52
      $region51: #{tpu_custom_call.1} parent=5 // pred_region
        %s2499 = ssub.s32 %s16, 2
        // Predicated region
        $region53: #{tpu_custom_call.1} parent=51 // pred_check
          %p2500 = pneg %p113
        $region54: #{tpu_custom_call.1} parent=51 // pred_check_branch
          %2502 = sbr.rel (%p2500) target = $region56
        $region55: #{tpu_custom_call.1} parent=51 // pred_region
          %s2503 = sand.u32 %s98, 1
          %s2504 = scalar_lea.sflag [#allocation4], %s2503
          %s2505 = sand.u32 %s98, 1
          %s2506 = smul.addr %s2505, 256
          %s2507 = scalar_lea.vmem [#allocation8], %s2506
          %2508 = dma.done %s2504, 4096
        $region56: #{tpu_custom_call.1} parent=51 // pred_fallthru
          _
      $region52: #{tpu_custom_call.1} parent=5 // pred_fallthru
        _
    $region6: #{tpu_custom_call.1} parent=1 // loop_footer
      %s20 = sadd.s32 1, %s16
    $region7: #{tpu_custom_call.1} parent=1 // loop_footer_branch
      %15 = sbr.rel target = $region3
    $region8: #{tpu_custom_call.1} parent=1 // loop_exit
      _
    %2509 = vsyncpa [#allocation3], 1
    %s2510 = scalar_lea.sflag [#allocation3], 1
    %2511 = vsyncpa %s2510, 1
    %2512 = vsyncpa [#allocation6], 1
    %2513 = vsyncpa [#allocation4], 1
    %s2514 = scalar_lea.sflag [#allocation4], 1
    %2515 = vsyncpa %s2514, 1

</llo_original>
